<compile_context>
chip_gen: v7x
topology: tpu7x:2x2x1
jax: 0.10.0
libtpu: 0.0.40
codegen_flags: <defaults>
</compile_context>

<pallas_src>
import jax
import jax.numpy as jnp
from jax.experimental import pallas as pl
from jax.experimental.pallas import tpu as pltpu

PATCH = 16
C_IN = 3
HIDDEN = 768
IMG = 224
N_PATCHES = (IMG // PATCH) * (IMG // PATCH)   # 196
K_IN = C_IN * PATCH * PATCH                   # 768 (im2col feature dim)
BLK_H = 384                                   # 768 / 2 blocks over the hidden axis


def _patch_embed_kernel(w_ref, p_ref, b_ref, out_ref, cls_ref):
    # w_ref  : (BLK_H, 768)   flattened conv-weight rows for this block
    # p_ref  : (768, 196)     im2col patches, (c*kh*kw, patch) layout (resident)
    # b_ref  : (BLK_H, 1)     bias rows
    # out_ref: (BLK_H, 196)   conv-output rows in (hidden, patch) memory order
    # cls_ref: (BLK_H, 1)     AvgPool2d(14) == mean over the 196 patches
    acc = jnp.dot(w_ref[...], p_ref[...], preferred_element_type=jnp.float32)
    b = b_ref[...]
    out_ref[...] = acc + b
    # mean(acc + b) == mean(acc) + b : fold bias into the cls expression so the
    # biased accumulator is not re-read for the pooling reduction.
    cls_ref[...] = acc.mean(axis=1, keepdims=True) + b


def _run_kernel(w_mat, patches_t, bias2d):
    out_shapes = (
        jax.ShapeDtypeStruct((HIDDEN, N_PATCHES), jnp.float32),
        jax.ShapeDtypeStruct((HIDDEN, 1), jnp.float32),
    )
    return pl.pallas_call(
        _patch_embed_kernel,
        out_shape=out_shapes,
        grid=(HIDDEN // BLK_H,),                                 # grid=(2,)
        in_specs=[
            pl.BlockSpec((BLK_H, K_IN), lambda i: (i, 0)),       # weight block
            pl.BlockSpec((K_IN, N_PATCHES), lambda i: (0, 0)),   # patches (resident)
            pl.BlockSpec((BLK_H, 1), lambda i: (i, 0)),          # bias block
        ],
        out_specs=(
            pl.BlockSpec((BLK_H, N_PATCHES), lambda i: (i, 0)),
            pl.BlockSpec((BLK_H, 1), lambda i: (i, 0)),
        ),
        compiler_params=pltpu.CompilerParams(
            # 1 block per TensorCore on v7x; no-op (but harmless) on v5e/v6e.
            dimension_semantics=("parallel",),
            # Let XLA fuse the im2col transpose producer into the patches DMA.
            allow_input_fusion=[False, True, False],
        ),
    )(w_mat, patches_t, bias2d)


def patch_embeddings_forward(x, weight, bias):
    """x: (1, 3, 224, 224) NCHW.  weight: (768, 3, 16, 16) OIHW.  bias: (768,)."""
    B, C, H, W = x.shape
    assert B == 1, "module hardcodes batch=1 (196 patches / reshape to (1,196,768))"
    assert (C, H, W) == (C_IN, IMG, IMG)
    nh, nw = H // PATCH, W // PATCH

    # --- glue: im2col patch extraction in (feature, patch) layout so the kernel
    #     output is already in the conv's (hidden, patch) memory order.
    #     Per-feature order = (c, kh, kw), matching the OIHW weight flattening.
    #     allow_input_fusion above asks XLA to fuse this producer into the
    #     pallas_call operand DMA rather than materialising it in HBM.
    # TODO(synk): if fusion does not trigger, move im2col fully in-kernel by
    #             DMA-ing x[0] to VMEM and building P with strided pl.ds reads.
    patches_t = (
        x[0]
        .reshape(C, nh, PATCH, nw, PATCH)
        .transpose(0, 2, 4, 1, 3)              # (C, kh, kw, nh, nw)
        .reshape(K_IN, nh * nw)                # (768, 196)
    )
    w_mat = weight.reshape(HIDDEN, K_IN)       # (768, 768), no transpose
    bias2d = bias.reshape(HIDDEN, 1)
    # TODO(synk): casting w_mat/patches_t to bf16 (f32 accum) saves ~3x MXU
    #             passes and ~30% HBM but is borderline vs the 1e-3 gate.

    # --- hot path in Pallas: matmul + bias + AvgPool2d(14) mean ---
    conv_flat, cls_mean = _run_kernel(w_mat, patches_t, bias2d)

    # --- glue: reproduce torch flatten / raw-reshape / cat semantics exactly.
    #     conv_flat (768, 196) is the conv output flattened over space; torch's
    #     reshape to (1, 196, 768) is a raw row-major reinterpret => free here.
    out_seq = conv_flat.reshape(1, N_PATCHES, HIDDEN)
    cls_seq = cls_mean.reshape(1, 1, HIDDEN)
    return jnp.concatenate((cls_seq, out_seq), axis=1)     # (1, 197, 768)


def _reference_forward(x, weight, bias):
    conv = jax.lax.conv_general_dilated(
        x, weight, window_strides=(PATCH, PATCH), padding="VALID",
        dimension_numbers=("NCHW", "OIHW", "NCHW"),
    ) + bias.reshape(1, HIDDEN, 1, 1)
    cls = jnp.mean(conv, axis=(2, 3), keepdims=True)       # AvgPool2d(14)
    cls = cls.reshape(1, HIDDEN, 1).reshape(1, 1, HIDDEN)
    out = conv.reshape(1, HIDDEN, N_PATCHES).reshape(1, N_PATCHES, HIDDEN)
    return jnp.concatenate((cls, out), axis=1)


if __name__ == "__main__":
    key = jax.random.PRNGKey(0)
    kx, kw, kb = jax.random.split(key, 3)

    # Forward hardcodes 196 patches / 768 hidden / AvgPool2d(14), which implies
    # a (1, 3, 224, 224) NCHW input.
    x = jax.random.normal(kx, (1, C_IN, IMG, IMG), dtype=jnp.float32)
    weight = jax.random.normal(kw, (HIDDEN, C_IN, PATCH, PATCH), dtype=jnp.float32) * 0.02
    bias = jax.random.normal(kb, (HIDDEN,), dtype=jnp.float32) * 0.02

    out = patch_embeddings_forward(x, weight, bias)
    out = jax.block_until_ready(out)

    ref = _reference_forward(x, weight, bias)
    assert out.shape == (1, 197, 768), out.shape
    assert jnp.allclose(out, ref, atol=1e-3, rtol=1e-3), float(jnp.max(jnp.abs(out - ref)))

    print("KERNEL_OK")
</pallas_src>

<mosaic_0001>
module attributes {stable_mosaic.version = 11 : i64} {
  func.func @_patch_embed_kernel(%arg0: i32, %arg1: memref<384x768xf32, #tpu.memory_space<vmem>>, %arg2: memref<768x196xf32, #tpu.memory_space<vmem>>, %arg3: memref<384x1xf32, #tpu.memory_space<vmem>>, %arg4: memref<384x196xf32, #tpu.memory_space<vmem>>, %arg5: memref<384x1xf32, #tpu.memory_space<vmem>>) attributes {dimension_semantics = [#tpu.dimension_semantics<parallel>], iteration_bounds = array<i64: 2>, scalar_prefetch = 0 : i64, scratch_operands = 0 : i64, tpu.core_type = #tpu.core_type<tc>, window_params = [{transform_indices = @transform_0, window_bounds = array<i64: 384, 768>}, {pipeline_mode = #tpu.pipeline_mode<synchronous>, transform_indices = @transform_1, window_bounds = array<i64: 768, 196>}, {transform_indices = @transform_2, window_bounds = array<i64: 384, 1>}, {transform_indices = @transform_3, window_bounds = array<i64: 384, 196>}, {transform_indices = @transform_4, window_bounds = array<i64: 384, 1>}]} {
    %c0 = arith.constant 0 : index
    %c0_0 = arith.constant 0 : index
    %0 = vector.load %arg1[%c0, %c0_0] : memref<384x768xf32, #tpu.memory_space<vmem>>, vector<384x768xf32>
    %c0_1 = arith.constant 0 : index
    %c0_2 = arith.constant 0 : index
    %1 = vector.load %arg2[%c0_1, %c0_2] : memref<768x196xf32, #tpu.memory_space<vmem>>, vector<768x196xf32>
    %cst = arith.constant dense<0.000000e+00> : vector<384x196xf32>
    %2 = tpu.matmul %0, %1, %cst {dimension_numbers = #tpu.dot_dimension_numbers<[1], [0], [0], [1], [0, 0, 1, 1], [], []>} : vector<384x768xf32>, vector<768x196xf32>, vector<384x196xf32> -> vector<384x196xf32>
    %c0_3 = arith.constant 0 : index
    %c0_4 = arith.constant 0 : index
    %3 = vector.load %arg3[%c0_3, %c0_4] : memref<384x1xf32, #tpu.memory_space<vmem>>, vector<384x1xf32>
    %4 = vector.broadcast %3 : vector<384x1xf32> to vector<384x196xf32>
    %5 = arith.addf %2, %4 : vector<384x196xf32>
    %c0_5 = arith.constant 0 : index
    %c0_6 = arith.constant 0 : index
    %6 = vector.load %arg4[%c0_5, %c0_6] : memref<384x196xf32, #tpu.memory_space<vmem>>, vector<384x196xf32>
    tpu.vector_store %arg4[%c0_5, %c0_6], %5 {strides = array<i32>} : memref<384x196xf32, #tpu.memory_space<vmem>>, vector<384x196xf32>,
    %cst_7 = arith.constant dense<0.000000e+00> : vector<384xf32>
    %7 = vector.multi_reduction <add>, %2, %cst_7 [1] : vector<384x196xf32> to vector<384xf32>
    %8 = vector.shape_cast %7 : vector<384xf32> to vector<384x1xf32>
    %cst_8 = arith.constant 1.960000e+02 : f32
    %9 = vector.broadcast %cst_8 : f32 to vector<384x1xf32>
    %10 = arith.divf %8, %9 : vector<384x1xf32>
    %11 = arith.addf %10, %3 : vector<384x1xf32>
    %c0_9 = arith.constant 0 : index
    %c0_10 = arith.constant 0 : index
    %12 = vector.load %arg5[%c0_9, %c0_10] : memref<384x1xf32, #tpu.memory_space<vmem>>, vector<384x1xf32>
    tpu.vector_store %arg5[%c0_9, %c0_10], %11 {strides = array<i32>} : memref<384x1xf32, #tpu.memory_space<vmem>>, vector<384x1xf32>,
    return
  }
  func.func @transform_0(%arg0: i32) -> (i32, i32) {
    %c0_i32 = arith.constant 0 : i32
    %c0_i32_0 = arith.constant 0 : i32
    return %arg0, %c0_i32 : i32, i32
  }
  func.func @transform_1(%arg0: i32) -> (i32, i32) {
    %c0_i32 = arith.constant 0 : i32
    %c0_i32_0 = arith.constant 0 : i32
    %c0_i32_1 = arith.constant 0 : i32
    return %c0_i32, %c0_i32_0 : i32, i32
  }
  func.func @transform_2(%arg0: i32) -> (i32, i32) {
    %c0_i32 = arith.constant 0 : i32
    %c0_i32_0 = arith.constant 0 : i32
    return %arg0, %c0_i32 : i32, i32
  }
  func.func @transform_3(%arg0: i32) -> (i32, i32) {
    %c0_i32 = arith.constant 0 : i32
    %c0_i32_0 = arith.constant 0 : i32
    return %arg0, %c0_i32 : i32, i32
  }
  func.func @transform_4(%arg0: i32) -> (i32, i32) {
    %c0_i32 = arith.constant 0 : i32
    %c0_i32_0 = arith.constant 0 : i32
    return %arg0, %c0_i32 : i32, i32
  }
}

</mosaic_0001>

<llo_original>
// kernel: tpu_custom_call.1
$region0: #{tpu_custom_call.1}
  #allocation0 [shape = 'u32[]', space=smem, size = 0x4, offset = 0x4, fixed_abs, tag = 'smem constant byte address 0x4 - core index']
  #allocation1 [shape = 'u32[144,128]{1,0:T(1,128)}', space=vmem, size = 0x12000, scoped, tag = 'internal scratch']
  %s0 = inlined_call_operand.hbm [shape: f32[768,768], index: 0, kind: input, shape index: {}]
  %s1 = inlined_call_operand.vmem [shape: f32[768,196], index: 1, kind: input, shape index: {}]
  %s2 = inlined_call_operand.vmem [shape: f32[768,1], index: 2, kind: input, shape index: {}]
  %s3 = inlined_call_operand.vmem [shape: f32[768,196], index: 3, kind: output, shape index: {0}]
  %s4 = inlined_call_operand.vmem [shape: f32[768,1], index: 4, kind: output, shape index: {1}]
  %5 = xla_tuple %s3, %s4
  %s6 = sld [smem:[#allocation0]]
  $region57: #{tpu_custom_call.1} parent=0
    _
  %s8 = ssub.s32 1, %s6
  %s9 = scalar_select 0, %s8, %s6
  $region1: #{tpu_custom_call.1} parent=0
    #allocation2 [shape = 'u8[2359296]{0}', space=vmem, size = 0x240000, scoped, tag = 'input window, operand 0']
    #allocation3 [shape = 's32[2]{0}', space=sflag, size = 0x8, scoped, tag = 'scoped memory for tpu_custom_call.1']
    %10 = vsyncpa [#allocation3], 0
    %s11 = scalar_lea.sflag [#allocation3], 1
    %12 = vsyncpa %s11, 0
    loop: start=0, step=1, limit=4
    $region2: #{tpu_custom_call.1} parent=1 // loop_pre_header
      _
    $region3: #{tpu_custom_call.1} parent=1 // loop_header
      %s14 = sphi 0, %s18
      %p15 = scmp.ge.s32.totalorder %s14, 4
      %s24 = sphi 0, %s26
      %s27 = sphi 0, %s24
      %s28 = sphi 0, %s27
      %s44 = sphi 0, %s28
      %s48 = sphi 0, %s48
      %s50 = sphi 0, %s48
      %s51 = sphi 0, %s50
      %s65 = sphi 0, %s51
      %s71 = sphi 0, %s73
      %s74 = sphi 0, %s71
      %s75 = sphi 0, %s74
      %s91 = sphi 0, %s75
      %s97 = sphi 0, %s99
      %s100 = sphi 0, %s97
      %s101 = sphi 0, %s100
      %s117 = sphi 0, %s101
      %s123 = sphi 0, %s125
      %s126 = sphi 0, %s123
      %s127 = sphi 0, %s126
      %s143 = sphi 0, %s127
    $region4: #{tpu_custom_call.1} parent=1 // loop_header_branch
      %17 = sbr.rel (%p15) target = $region8
    $region5: #{tpu_custom_call.1} parent=1 // loop_body
      %s19 = ssub.s32 %s14, 1
      %s20 = ssub.s32 %s14, 2
      %s21 = sadd.s32 %s14, 1
      %s22 = ssub.s32 %s14, %s21
      %p23 = scmp.eq.s32.totalorder %s22, 0
      %s25 = sadd.s32 %s24, 1
      %s26 = scalar_select %p23, %s24, %s25
      %p29 = pneg %p23
      %p30 = scmp.eq.s32.totalorder %s14, 1
      %p31 = por %p29, %p30
      %p32 = scmp.ne.s32.totalorder %s24, %s27
      %p33 = scmp.eq.s32.totalorder %s14, 0
      %p34 = por %p32, %p33
      %p35 = scmp.ne.s32.totalorder %s24, %s27
      %p36 = scmp.eq.s32.totalorder %s19, 1
      %p37 = por %p35, %p36
      %p38 = scmp.ne.s32.totalorder %s27, %s28
      %p39 = scmp.eq.s32.totalorder %s19, 0
      %p40 = por %p38, %p39
      %p41 = scmp.ne.s32.totalorder %s27, %s28
      %p42 = scmp.eq.s32.totalorder %s20, 1
      %p43 = por %p41, %p42
      %p45 = scmp.ne.s32.totalorder %s28, %s44
      %p46 = scmp.eq.s32.totalorder %s20, 0
      %p47 = por %p45, %p46
      %s49 = sadd.s32 %s48, 1
      %p52 = scmp.eq.s32.totalorder %s14, 1
      %p53 = scmp.ne.s32.totalorder %s48, %s50
      %p54 = scmp.eq.s32.totalorder %s14, 0
      %p55 = por %p53, %p54
      %p56 = scmp.ne.s32.totalorder %s48, %s50
      %p57 = scmp.eq.s32.totalorder %s19, 1
      %p58 = por %p56, %p57
      %p59 = scmp.ne.s32.totalorder %s50, %s51
      %p60 = scmp.eq.s32.totalorder %s19, 0
      %p61 = por %p59, %p60
      %p62 = scmp.ne.s32.totalorder %s50, %s51
      %p63 = scmp.eq.s32.totalorder %s20, 1
      %p64 = por %p62, %p63
      %p66 = scmp.ne.s32.totalorder %s51, %s65
      %p67 = scmp.eq.s32.totalorder %s20, 0
      %p68 = por %p66, %p67
      %s69 = ssub.s32 %s14, %s21
      %p70 = scmp.eq.s32.totalorder %s69, 0
      %s72 = sadd.s32 %s71, 1
      %s73 = scalar_select %p70, %s71, %s72
      %p76 = pneg %p70
      %p77 = scmp.eq.s32.totalorder %s14, 1
      %p78 = por %p76, %p77
      %p79 = scmp.ne.s32.totalorder %s71, %s74
      %p80 = scmp.eq.s32.totalorder %s14, 0
      %p81 = por %p79, %p80
      %p82 = scmp.ne.s32.totalorder %s71, %s74
      %p83 = scmp.eq.s32.totalorder %s19, 1
      %p84 = por %p82, %p83
      %p85 = scmp.ne.s32.totalorder %s74, %s75
      %p86 = scmp.eq.s32.totalorder %s19, 0
      %p87 = por %p85, %p86
      %p88 = scmp.ne.s32.totalorder %s74, %s75
      %p89 = scmp.eq.s32.totalorder %s20, 1
      %p90 = por %p88, %p89
      %p92 = scmp.ne.s32.totalorder %s75, %s91
      %p93 = scmp.eq.s32.totalorder %s20, 0
      %p94 = por %p92, %p93
      %s95 = ssub.s32 %s14, %s21
      %p96 = scmp.eq.s32.totalorder %s95, 0
      %s98 = sadd.s32 %s97, 1
      %s99 = scalar_select %p96, %s97, %s98
      %p102 = pneg %p96
      %p103 = scmp.eq.s32.totalorder %s14, 1
      %p104 = por %p102, %p103
      %p105 = scmp.ne.s32.totalorder %s97, %s100
      %p106 = scmp.eq.s32.totalorder %s14, 0
      %p107 = por %p105, %p106
      %p108 = scmp.ne.s32.totalorder %s97, %s100
      %p109 = scmp.eq.s32.totalorder %s19, 1
      %p110 = por %p108, %p109
      %p111 = scmp.ne.s32.totalorder %s100, %s101
      %p112 = scmp.eq.s32.totalorder %s19, 0
      %p113 = por %p111, %p112
      %p114 = scmp.ne.s32.totalorder %s100, %s101
      %p115 = scmp.eq.s32.totalorder %s20, 1
      %p116 = por %p114, %p115
      %p118 = scmp.ne.s32.totalorder %s101, %s117
      %p119 = scmp.eq.s32.totalorder %s20, 0
      %p120 = por %p118, %p119
      %s121 = ssub.s32 %s14, %s21
      %p122 = scmp.eq.s32.totalorder %s121, 0
      %s124 = sadd.s32 %s123, 1
      %s125 = scalar_select %p122, %s123, %s124
      %p128 = pneg %p122
      %p129 = scmp.eq.s32.totalorder %s14, 1
      %p130 = por %p128, %p129
      %p131 = scmp.ne.s32.totalorder %s123, %s126
      %p132 = scmp.eq.s32.totalorder %s14, 0
      %p133 = por %p131, %p132
      %p134 = scmp.ne.s32.totalorder %s123, %s126
      %p135 = scmp.eq.s32.totalorder %s19, 1
      %p136 = por %p134, %p135
      %p137 = scmp.ne.s32.totalorder %s126, %s127
      %p138 = scmp.eq.s32.totalorder %s19, 0
      %p139 = por %p137, %p138
      %p140 = scmp.ne.s32.totalorder %s126, %s127
      %p141 = scmp.eq.s32.totalorder %s20, 1
      %p142 = por %p140, %p141
      %p144 = scmp.ne.s32.totalorder %s127, %s143
      %p145 = scmp.eq.s32.totalorder %s20, 0
      %p146 = por %p144, %p145
      %p147 = scmp.le.s32.totalorder 1, %s14
      %p148 = scmp.lt.s32.totalorder %s14, 3
      %p149 = pnand %p147, %p148
      %p150 = pneg %p149
      // Predicated region
      $region9: #{tpu_custom_call.1} parent=5 // pred_check
        _
      $region10: #{tpu_custom_call.1} parent=5 // pred_check_branch
        %152 = sbr.rel (%p149) target = $region12
      $region11: #{tpu_custom_call.1} parent=5 // pred_region
        %s153 = ssub.s32 %s14, 1
        // Predicated region
        $region13: #{tpu_custom_call.1} parent=11 // pred_check
          %p154 = pneg %p61
        $region14: #{tpu_custom_call.1} parent=11 // pred_check_branch
          %156 = sbr.rel (%p154) target = $region16
        $region15: #{tpu_custom_call.1} parent=11 // pred_region
          _
        $region16: #{tpu_custom_call.1} parent=11 // pred_fallthru
          _
      $region12: #{tpu_custom_call.1} parent=5 // pred_fallthru
        _
      %p157 = scmp.lt.s32.totalorder %s14, 2
      // Predicated region
      $region17: #{tpu_custom_call.1} parent=5 // pred_check
        %p158 = pneg %p157
      $region18: #{tpu_custom_call.1} parent=5 // pred_check_branch
        %160 = sbr.rel (%p158) target = $region20
      $region19: #{tpu_custom_call.1} parent=5 // pred_region
        // Predicated region
        $region21: #{tpu_custom_call.1} parent=19 // pred_check
          %p161 = pneg %p34
        $region22: #{tpu_custom_call.1} parent=19 // pred_check_branch
          %163 = sbr.rel (%p161) target = $region24
        $region23: #{tpu_custom_call.1} parent=19 // pred_region
          %s164 = sand.u32 %s24, 1
          %s165 = scalar_lea.sflag [#allocation3], %s164
          %s166 = sand.u32 %s24, 1
          %s167 = smul.addr %s166, 2304
          %s168 = scalar_lea.vmem [#allocation2], %s167
          %s169 = smul.u32 48, %s14
          %s171 = ssub.s32 36864, 36864
          %172 = vsyncadd %s165, %s171
          %s173 = smul.addr %s169, 6
          %s174 = smul.addr %s173, 128
          %s175 = scalar_lea.hbm %s0, %s174
          %s176 = sshll.u32 %s168, 4
          %s177 = int_to_ptr.vmem [resolvable:$true] %s176
          %182 = dma.hbm_to_vmem [thread:$0]  %s175, 36864, %s177, %s165, 768, 768, 48
        $region24: #{tpu_custom_call.1} parent=19 // pred_fallthru
          _
        // Predicated region
        $region25: #{tpu_custom_call.1} parent=19 // pred_check
          %p183 = pneg %p81
        $region26: #{tpu_custom_call.1} parent=19 // pred_check_branch
          %185 = sbr.rel (%p183) target = $region28
        $region27: #{tpu_custom_call.1} parent=19 // pred_region
          %s186 = smul.u32 48, %s14
          %p187 = scmp.lt.s32.totalorder %s186, 95
          %s188 = scalar_select %p187, %s186, 95
          %s189 = smul.addr %s188, 8
          %s190 = scalar_lea.vmem %s2, %s189
          %s191 = smul.u32 48, %s14
        $region28: #{tpu_custom_call.1} parent=19 // pred_fallthru
          _
      $region20: #{tpu_custom_call.1} parent=5 // pred_fallthru
        _
      %p192 = scmp.le.s32.totalorder 1, %s14
      %p193 = scmp.lt.s32.totalorder %s14, 3
      %p194 = pnand %p192, %p193
      %p195 = pneg %p194
      // Predicated region
      $region29: #{tpu_custom_call.1} parent=5 // pred_check
        _
      $region30: #{tpu_custom_call.1} parent=5 // pred_check_branch
        %197 = sbr.rel (%p194) target = $region32
      $region31: #{tpu_custom_call.1} parent=5 // pred_region
        %s198 = ssub.s32 %s14, 1
        %s199 = sand.u32 %s27, 1
        %s200 = scalar_lea.sflag [#allocation3], %s199
        %s201 = sand.u32 %s27, 1
        %s202 = smul.addr %s201, 2304
        %s203 = scalar_lea.vmem [#allocation2], %s202
        // Predicated region
        $region33: #{tpu_custom_call.1} parent=31 // pred_check
          %p204 = pneg %p40
        $region34: #{tpu_custom_call.1} parent=31 // pred_check_branch
          %206 = sbr.rel (%p204) target = $region36
        $region35: #{tpu_custom_call.1} parent=31 // pred_region
          %207 = dma.done %s200, 36864
        $region36: #{tpu_custom_call.1} parent=31 // pred_fallthru
          _
        %s208 = sand.u32 %s27, 1
        %s209 = scalar_lea.sflag [#allocation3], %s208
        %s210 = sand.u32 %s27, 1
        %s211 = smul.addr %s210, 2304
        %s212 = scalar_lea.vmem [#allocation2], %s211
        %p213 = pneg %p40
        %p214 = pneg %p37
        %p215 = pneg %p61
        %p216 = pneg %p58
        %s217 = smul.u32 48, %s19
        %p218 = scmp.lt.s32.totalorder %s217, 95
        %s219 = scalar_select %p218, %s217, 95
        %s220 = smul.addr %s219, 8
        %s221 = scalar_lea.vmem %s2, %s220
        %p222 = pneg %p87
        %p223 = pneg %p84
        %p224 = pneg %p113
        %p225 = pneg %p110
        %s226 = smul.u32 48, %s19
        %p227 = scmp.lt.s32.totalorder %s226, 95
        %s228 = scalar_select %p227, %s226, 95
        %s229 = smul.addr %s228, 2
        %s230 = smul.addr %s229, 8
        %s231 = scalar_lea.vmem %s3, %s230
        %p232 = pneg %p139
        %p233 = pneg %p136
        %s234 = smul.u32 48, %s19
        %p235 = scmp.lt.s32.totalorder %s234, 95
        %s236 = scalar_select %p235, %s234, 95
        %s237 = smul.addr %s236, 8
        %s238 = scalar_lea.vmem %s4, %s237
        %s239 = smul.u32 48, %s19
        %s240 = smul.u32 48, %s19
        %p241 = scmp.lt.s32.totalorder %s240, 95
        %s242 = scalar_select %p241, %s240, 95
        %s243 = smul.addr %s242, 8
        %s244 = scalar_lea.vmem %s2, %s243
        %s245 = smul.u32 48, %s19
        %s246 = smul.u32 48, %s19
        %p247 = scmp.lt.s32.totalorder %s246, 95
        %s248 = scalar_select %p247, %s246, 95
        %s249 = smul.addr %s248, 2
        %s250 = smul.addr %s249, 8
        %s251 = scalar_lea.vmem %s3, %s250
        %s252 = smul.u32 48, %s19
        %s253 = smul.u32 48, %s19
        %p254 = scmp.lt.s32.totalorder %s253, 95
        %s255 = scalar_select %p254, %s253, 95
        %s256 = smul.addr %s255, 8
        %s257 = scalar_lea.vmem %s4, %s256
        %s258 = smul.u32 48, %s19
        %v259 = vld [vmem:[%s203] sm:$0xff]
        %v260 = vld [vmem:[%s203 + $0x8] sm:$0xff]
        %v261 = vld [vmem:[%s203 + $0x10] sm:$0xff]
        %v262 = vld [vmem:[%s203 + $0x18] sm:$0xff]
        %v263 = vld [vmem:[%s203 + $0x20] sm:$0xff]
        %v264 = vld [vmem:[%s203 + $0x28] sm:$0xff]
        %v265 = vld [vmem:[%s203 + $0x30] sm:$0xff]
        %v266 = vld [vmem:[%s203 + $0x38] sm:$0xff]
        %v267 = vld [vmem:[%s203 + $0x40] sm:$0xff]
        %v268 = vld [vmem:[%s203 + $0x48] sm:$0xff]
        %v269 = vld [vmem:[%s203 + $0x50] sm:$0xff]
        %v270 = vld [vmem:[%s203 + $0x58] sm:$0xff]
        %v271 = vld [vmem:[%s203 + $0x60] sm:$0xff]
        %v272 = vld [vmem:[%s203 + $0x68] sm:$0xff]
        %v273 = vld [vmem:[%s203 + $0x70] sm:$0xff]
        %v274 = vld [vmem:[%s203 + $0x78] sm:$0xff]
        %v275 = vld [vmem:[%s203 + $0x80] sm:$0xff]
        %v276 = vld [vmem:[%s203 + $0x88] sm:$0xff]
        %v277 = vld [vmem:[%s203 + $0x90] sm:$0xff]
        %v278 = vld [vmem:[%s203 + $0x98] sm:$0xff]
        %v279 = vld [vmem:[%s203 + $0xa0] sm:$0xff]
        %v280 = vld [vmem:[%s203 + $0xa8] sm:$0xff]
        %v281 = vld [vmem:[%s203 + $0xb0] sm:$0xff]
        %v282 = vld [vmem:[%s203 + $0xb8] sm:$0xff]
        %v283 = vld [vmem:[%s203 + $0xc0] sm:$0xff]
        %v284 = vld [vmem:[%s203 + $0xc8] sm:$0xff]
        %v285 = vld [vmem:[%s203 + $0xd0] sm:$0xff]
        %v286 = vld [vmem:[%s203 + $0xd8] sm:$0xff]
        %v287 = vld [vmem:[%s203 + $0xe0] sm:$0xff]
        %v288 = vld [vmem:[%s203 + $0xe8] sm:$0xff]
        %v289 = vld [vmem:[%s203 + $0xf0] sm:$0xff]
        %v290 = vld [vmem:[%s203 + $0xf8] sm:$0xff]
        %v291 = vld [vmem:[%s203 + $0x100] sm:$0xff]
        %v292 = vld [vmem:[%s203 + $0x108] sm:$0xff]
        %v293 = vld [vmem:[%s203 + $0x110] sm:$0xff]
        %v294 = vld [vmem:[%s203 + $0x118] sm:$0xff]
        %v295 = vld [vmem:[%s203 + $0x120] sm:$0xff]
        %v296 = vld [vmem:[%s203 + $0x128] sm:$0xff]
        %v297 = vld [vmem:[%s203 + $0x130] sm:$0xff]
        %v298 = vld [vmem:[%s203 + $0x138] sm:$0xff]
        %v299 = vld [vmem:[%s203 + $0x140] sm:$0xff]
        %v300 = vld [vmem:[%s203 + $0x148] sm:$0xff]
        %v301 = vld [vmem:[%s203 + $0x150] sm:$0xff]
        %v302 = vld [vmem:[%s203 + $0x158] sm:$0xff]
        %v303 = vld [vmem:[%s203 + $0x160] sm:$0xff]
        %v304 = vld [vmem:[%s203 + $0x168] sm:$0xff]
        %v305 = vld [vmem:[%s203 + $0x170] sm:$0xff]
        %v306 = vld [vmem:[%s203 + $0x178] sm:$0xff]
        %v307 = vld [vmem:[%s203 + $0x180] sm:$0xff]
        %v308 = vld [vmem:[%s203 + $0x188] sm:$0xff]
        %v309 = vld [vmem:[%s203 + $0x190] sm:$0xff]
        %v310 = vld [vmem:[%s203 + $0x198] sm:$0xff]
        %v311 = vld [vmem:[%s203 + $0x1a0] sm:$0xff]
        %v312 = vld [vmem:[%s203 + $0x1a8] sm:$0xff]
        %v313 = vld [vmem:[%s203 + $0x1b0] sm:$0xff]
        %v314 = vld [vmem:[%s203 + $0x1b8] sm:$0xff]
        %v315 = vld [vmem:[%s203 + $0x1c0] sm:$0xff]
        %v316 = vld [vmem:[%s203 + $0x1c8] sm:$0xff]
        %v317 = vld [vmem:[%s203 + $0x1d0] sm:$0xff]
        %v318 = vld [vmem:[%s203 + $0x1d8] sm:$0xff]
        %v319 = vld [vmem:[%s203 + $0x1e0] sm:$0xff]
        %v320 = vld [vmem:[%s203 + $0x1e8] sm:$0xff]
        %v321 = vld [vmem:[%s203 + $0x1f0] sm:$0xff]
        %v322 = vld [vmem:[%s203 + $0x1f8] sm:$0xff]
        %v323 = vld [vmem:[%s203 + $0x200] sm:$0xff]
        %v324 = vld [vmem:[%s203 + $0x208] sm:$0xff]
        %v325 = vld [vmem:[%s203 + $0x210] sm:$0xff]
        %v326 = vld [vmem:[%s203 + $0x218] sm:$0xff]
        %v327 = vld [vmem:[%s203 + $0x220] sm:$0xff]
        %v328 = vld [vmem:[%s203 + $0x228] sm:$0xff]
        %v329 = vld [vmem:[%s203 + $0x230] sm:$0xff]
        %v330 = vld [vmem:[%s203 + $0x238] sm:$0xff]
        %v331 = vld [vmem:[%s203 + $0x240] sm:$0xff]
        %v332 = vld [vmem:[%s203 + $0x248] sm:$0xff]
        %v333 = vld [vmem:[%s203 + $0x250] sm:$0xff]
        %v334 = vld [vmem:[%s203 + $0x258] sm:$0xff]
        %v335 = vld [vmem:[%s203 + $0x260] sm:$0xff]
        %v336 = vld [vmem:[%s203 + $0x268] sm:$0xff]
        %v337 = vld [vmem:[%s203 + $0x270] sm:$0xff]
        %v338 = vld [vmem:[%s203 + $0x278] sm:$0xff]
        %v339 = vld [vmem:[%s203 + $0x280] sm:$0xff]
        %v340 = vld [vmem:[%s203 + $0x288] sm:$0xff]
        %v341 = vld [vmem:[%s203 + $0x290] sm:$0xff]
        %v342 = vld [vmem:[%s203 + $0x298] sm:$0xff]
        %v343 = vld [vmem:[%s203 + $0x2a0] sm:$0xff]
        %v344 = vld [vmem:[%s203 + $0x2a8] sm:$0xff]
        %v345 = vld [vmem:[%s203 + $0x2b0] sm:$0xff]
        %v346 = vld [vmem:[%s203 + $0x2b8] sm:$0xff]
        %v347 = vld [vmem:[%s203 + $0x2c0] sm:$0xff]
        %v348 = vld [vmem:[%s203 + $0x2c8] sm:$0xff]
        %v349 = vld [vmem:[%s203 + $0x2d0] sm:$0xff]
        %v350 = vld [vmem:[%s203 + $0x2d8] sm:$0xff]
        %v351 = vld [vmem:[%s203 + $0x2e0] sm:$0xff]
        %v352 = vld [vmem:[%s203 + $0x2e8] sm:$0xff]
        %v353 = vld [vmem:[%s203 + $0x2f0] sm:$0xff]
        %v354 = vld [vmem:[%s203 + $0x2f8] sm:$0xff]
        %v355 = vld [vmem:[%s203 + $0x300] sm:$0xff]
        %v356 = vld [vmem:[%s203 + $0x308] sm:$0xff]
        %v357 = vld [vmem:[%s203 + $0x310] sm:$0xff]
        %v358 = vld [vmem:[%s203 + $0x318] sm:$0xff]
        %v359 = vld [vmem:[%s203 + $0x320] sm:$0xff]
        %v360 = vld [vmem:[%s203 + $0x328] sm:$0xff]
        %v361 = vld [vmem:[%s203 + $0x330] sm:$0xff]
        %v362 = vld [vmem:[%s203 + $0x338] sm:$0xff]
        %v363 = vld [vmem:[%s203 + $0x340] sm:$0xff]
        %v364 = vld [vmem:[%s203 + $0x348] sm:$0xff]
        %v365 = vld [vmem:[%s203 + $0x350] sm:$0xff]
        %v366 = vld [vmem:[%s203 + $0x358] sm:$0xff]
        %v367 = vld [vmem:[%s203 + $0x360] sm:$0xff]
        %v368 = vld [vmem:[%s203 + $0x368] sm:$0xff]
        %v369 = vld [vmem:[%s203 + $0x370] sm:$0xff]
        %v370 = vld [vmem:[%s203 + $0x378] sm:$0xff]
        %v371 = vld [vmem:[%s203 + $0x380] sm:$0xff]
        %v372 = vld [vmem:[%s203 + $0x388] sm:$0xff]
        %v373 = vld [vmem:[%s203 + $0x390] sm:$0xff]
        %v374 = vld [vmem:[%s203 + $0x398] sm:$0xff]
        %v375 = vld [vmem:[%s203 + $0x3a0] sm:$0xff]
        %v376 = vld [vmem:[%s203 + $0x3a8] sm:$0xff]
        %v377 = vld [vmem:[%s203 + $0x3b0] sm:$0xff]
        %v378 = vld [vmem:[%s203 + $0x3b8] sm:$0xff]
        %v379 = vld [vmem:[%s203 + $0x3c0] sm:$0xff]
        %v380 = vld [vmem:[%s203 + $0x3c8] sm:$0xff]
        %v381 = vld [vmem:[%s203 + $0x3d0] sm:$0xff]
        %v382 = vld [vmem:[%s203 + $0x3d8] sm:$0xff]
        %v383 = vld [vmem:[%s203 + $0x3e0] sm:$0xff]
        %v384 = vld [vmem:[%s203 + $0x3e8] sm:$0xff]
        %v385 = vld [vmem:[%s203 + $0x3f0] sm:$0xff]
        %v386 = vld [vmem:[%s203 + $0x3f8] sm:$0xff]
        %v387 = vld [vmem:[%s203 + $0x400] sm:$0xff]
        %v388 = vld [vmem:[%s203 + $0x408] sm:$0xff]
        %v389 = vld [vmem:[%s203 + $0x410] sm:$0xff]
        %v390 = vld [vmem:[%s203 + $0x418] sm:$0xff]
        %v391 = vld [vmem:[%s203 + $0x420] sm:$0xff]
        %v392 = vld [vmem:[%s203 + $0x428] sm:$0xff]
        %v393 = vld [vmem:[%s203 + $0x430] sm:$0xff]
        %v394 = vld [vmem:[%s203 + $0x438] sm:$0xff]
        %v395 = vld [vmem:[%s203 + $0x440] sm:$0xff]
        %v396 = vld [vmem:[%s203 + $0x448] sm:$0xff]
        %v397 = vld [vmem:[%s203 + $0x450] sm:$0xff]
        %v398 = vld [vmem:[%s203 + $0x458] sm:$0xff]
        %v399 = vld [vmem:[%s203 + $0x460] sm:$0xff]
        %v400 = vld [vmem:[%s203 + $0x468] sm:$0xff]
        %v401 = vld [vmem:[%s203 + $0x470] sm:$0xff]
        %v402 = vld [vmem:[%s203 + $0x478] sm:$0xff]
        %v403 = vld [vmem:[%s203 + $0x480] sm:$0xff]
        %v404 = vld [vmem:[%s203 + $0x488] sm:$0xff]
        %v405 = vld [vmem:[%s203 + $0x490] sm:$0xff]
        %v406 = vld [vmem:[%s203 + $0x498] sm:$0xff]
        %v407 = vld [vmem:[%s203 + $0x4a0] sm:$0xff]
        %v408 = vld [vmem:[%s203 + $0x4a8] sm:$0xff]
        %v409 = vld [vmem:[%s203 + $0x4b0] sm:$0xff]
        %v410 = vld [vmem:[%s203 + $0x4b8] sm:$0xff]
        %v411 = vld [vmem:[%s203 + $0x4c0] sm:$0xff]
        %v412 = vld [vmem:[%s203 + $0x4c8] sm:$0xff]
        %v413 = vld [vmem:[%s203 + $0x4d0] sm:$0xff]
        %v414 = vld [vmem:[%s203 + $0x4d8] sm:$0xff]
        %v415 = vld [vmem:[%s203 + $0x4e0] sm:$0xff]
        %v416 = vld [vmem:[%s203 + $0x4e8] sm:$0xff]
        %v417 = vld [vmem:[%s203 + $0x4f0] sm:$0xff]
        %v418 = vld [vmem:[%s203 + $0x4f8] sm:$0xff]
        %v419 = vld [vmem:[%s203 + $0x500] sm:$0xff]
        %v420 = vld [vmem:[%s203 + $0x508] sm:$0xff]
        %v421 = vld [vmem:[%s203 + $0x510] sm:$0xff]
        %v422 = vld [vmem:[%s203 + $0x518] sm:$0xff]
        %v423 = vld [vmem:[%s203 + $0x520] sm:$0xff]
        %v424 = vld [vmem:[%s203 + $0x528] sm:$0xff]
        %v425 = vld [vmem:[%s203 + $0x530] sm:$0xff]
        %v426 = vld [vmem:[%s203 + $0x538] sm:$0xff]
        %v427 = vld [vmem:[%s203 + $0x540] sm:$0xff]
        %v428 = vld [vmem:[%s203 + $0x548] sm:$0xff]
        %v429 = vld [vmem:[%s203 + $0x550] sm:$0xff]
        %v430 = vld [vmem:[%s203 + $0x558] sm:$0xff]
        %v431 = vld [vmem:[%s203 + $0x560] sm:$0xff]
        %v432 = vld [vmem:[%s203 + $0x568] sm:$0xff]
        %v433 = vld [vmem:[%s203 + $0x570] sm:$0xff]
        %v434 = vld [vmem:[%s203 + $0x578] sm:$0xff]
        %v435 = vld [vmem:[%s203 + $0x580] sm:$0xff]
        %v436 = vld [vmem:[%s203 + $0x588] sm:$0xff]
        %v437 = vld [vmem:[%s203 + $0x590] sm:$0xff]
        %v438 = vld [vmem:[%s203 + $0x598] sm:$0xff]
        %v439 = vld [vmem:[%s203 + $0x5a0] sm:$0xff]
        %v440 = vld [vmem:[%s203 + $0x5a8] sm:$0xff]
        %v441 = vld [vmem:[%s203 + $0x5b0] sm:$0xff]
        %v442 = vld [vmem:[%s203 + $0x5b8] sm:$0xff]
        %v443 = vld [vmem:[%s203 + $0x5c0] sm:$0xff]
        %v444 = vld [vmem:[%s203 + $0x5c8] sm:$0xff]
        %v445 = vld [vmem:[%s203 + $0x5d0] sm:$0xff]
        %v446 = vld [vmem:[%s203 + $0x5d8] sm:$0xff]
        %v447 = vld [vmem:[%s203 + $0x5e0] sm:$0xff]
        %v448 = vld [vmem:[%s203 + $0x5e8] sm:$0xff]
        %v449 = vld [vmem:[%s203 + $0x5f0] sm:$0xff]
        %v450 = vld [vmem:[%s203 + $0x5f8] sm:$0xff]
        %v451 = vld [vmem:[%s203 + $0x600] sm:$0xff]
        %v452 = vld [vmem:[%s203 + $0x608] sm:$0xff]
        %v453 = vld [vmem:[%s203 + $0x610] sm:$0xff]
        %v454 = vld [vmem:[%s203 + $0x618] sm:$0xff]
        %v455 = vld [vmem:[%s203 + $0x620] sm:$0xff]
        %v456 = vld [vmem:[%s203 + $0x628] sm:$0xff]
        %v457 = vld [vmem:[%s203 + $0x630] sm:$0xff]
        %v458 = vld [vmem:[%s203 + $0x638] sm:$0xff]
        %v459 = vld [vmem:[%s203 + $0x640] sm:$0xff]
        %v460 = vld [vmem:[%s203 + $0x648] sm:$0xff]
        %v461 = vld [vmem:[%s203 + $0x650] sm:$0xff]
        %v462 = vld [vmem:[%s203 + $0x658] sm:$0xff]
        %v463 = vld [vmem:[%s203 + $0x660] sm:$0xff]
        %v464 = vld [vmem:[%s203 + $0x668] sm:$0xff]
        %v465 = vld [vmem:[%s203 + $0x670] sm:$0xff]
        %v466 = vld [vmem:[%s203 + $0x678] sm:$0xff]
        %v467 = vld [vmem:[%s203 + $0x680] sm:$0xff]
        %v468 = vld [vmem:[%s203 + $0x688] sm:$0xff]
        %v469 = vld [vmem:[%s203 + $0x690] sm:$0xff]
        %v470 = vld [vmem:[%s203 + $0x698] sm:$0xff]
        %v471 = vld [vmem:[%s203 + $0x6a0] sm:$0xff]
        %v472 = vld [vmem:[%s203 + $0x6a8] sm:$0xff]
        %v473 = vld [vmem:[%s203 + $0x6b0] sm:$0xff]
        %v474 = vld [vmem:[%s203 + $0x6b8] sm:$0xff]
        %v475 = vld [vmem:[%s203 + $0x6c0] sm:$0xff]
        %v476 = vld [vmem:[%s203 + $0x6c8] sm:$0xff]
        %v477 = vld [vmem:[%s203 + $0x6d0] sm:$0xff]
        %v478 = vld [vmem:[%s203 + $0x6d8] sm:$0xff]
        %v479 = vld [vmem:[%s203 + $0x6e0] sm:$0xff]
        %v480 = vld [vmem:[%s203 + $0x6e8] sm:$0xff]
        %v481 = vld [vmem:[%s203 + $0x6f0] sm:$0xff]
        %v482 = vld [vmem:[%s203 + $0x6f8] sm:$0xff]
        %v483 = vld [vmem:[%s203 + $0x700] sm:$0xff]
        %v484 = vld [vmem:[%s203 + $0x708] sm:$0xff]
        %v485 = vld [vmem:[%s203 + $0x710] sm:$0xff]
        %v486 = vld [vmem:[%s203 + $0x718] sm:$0xff]
        %v487 = vld [vmem:[%s203 + $0x720] sm:$0xff]
        %v488 = vld [vmem:[%s203 + $0x728] sm:$0xff]
        %v489 = vld [vmem:[%s203 + $0x730] sm:$0xff]
        %v490 = vld [vmem:[%s203 + $0x738] sm:$0xff]
        %v491 = vld [vmem:[%s203 + $0x740] sm:$0xff]
        %v492 = vld [vmem:[%s203 + $0x748] sm:$0xff]
        %v493 = vld [vmem:[%s203 + $0x750] sm:$0xff]
        %v494 = vld [vmem:[%s203 + $0x758] sm:$0xff]
        %v495 = vld [vmem:[%s203 + $0x760] sm:$0xff]
        %v496 = vld [vmem:[%s203 + $0x768] sm:$0xff]
        %v497 = vld [vmem:[%s203 + $0x770] sm:$0xff]
        %v498 = vld [vmem:[%s203 + $0x778] sm:$0xff]
        %v499 = vld [vmem:[%s203 + $0x780] sm:$0xff]
        %v500 = vld [vmem:[%s203 + $0x788] sm:$0xff]
        %v501 = vld [vmem:[%s203 + $0x790] sm:$0xff]
        %v502 = vld [vmem:[%s203 + $0x798] sm:$0xff]
        %v503 = vld [vmem:[%s203 + $0x7a0] sm:$0xff]
        %v504 = vld [vmem:[%s203 + $0x7a8] sm:$0xff]
        %v505 = vld [vmem:[%s203 + $0x7b0] sm:$0xff]
        %v506 = vld [vmem:[%s203 + $0x7b8] sm:$0xff]
        %v507 = vld [vmem:[%s203 + $0x7c0] sm:$0xff]
        %v508 = vld [vmem:[%s203 + $0x7c8] sm:$0xff]
        %v509 = vld [vmem:[%s203 + $0x7d0] sm:$0xff]
        %v510 = vld [vmem:[%s203 + $0x7d8] sm:$0xff]
        %v511 = vld [vmem:[%s203 + $0x7e0] sm:$0xff]
        %v512 = vld [vmem:[%s203 + $0x7e8] sm:$0xff]
        %v513 = vld [vmem:[%s203 + $0x7f0] sm:$0xff]
        %v514 = vld [vmem:[%s203 + $0x7f8] sm:$0xff]
        %v515 = vld [vmem:[%s203 + $0x800] sm:$0xff]
        %v516 = vld [vmem:[%s203 + $0x808] sm:$0xff]
        %v517 = vld [vmem:[%s203 + $0x810] sm:$0xff]
        %v518 = vld [vmem:[%s203 + $0x818] sm:$0xff]
        %v519 = vld [vmem:[%s203 + $0x820] sm:$0xff]
        %v520 = vld [vmem:[%s203 + $0x828] sm:$0xff]
        %v521 = vld [vmem:[%s203 + $0x830] sm:$0xff]
        %v522 = vld [vmem:[%s203 + $0x838] sm:$0xff]
        %v523 = vld [vmem:[%s203 + $0x840] sm:$0xff]
        %v524 = vld [vmem:[%s203 + $0x848] sm:$0xff]
        %v525 = vld [vmem:[%s203 + $0x850] sm:$0xff]
        %v526 = vld [vmem:[%s203 + $0x858] sm:$0xff]
        %v527 = vld [vmem:[%s203 + $0x860] sm:$0xff]
        %v528 = vld [vmem:[%s203 + $0x868] sm:$0xff]
        %v529 = vld [vmem:[%s203 + $0x870] sm:$0xff]
        %v530 = vld [vmem:[%s203 + $0x878] sm:$0xff]
        %v531 = vld [vmem:[%s203 + $0x880] sm:$0xff]
        %v532 = vld [vmem:[%s203 + $0x888] sm:$0xff]
        %v533 = vld [vmem:[%s203 + $0x890] sm:$0xff]
        %v534 = vld [vmem:[%s203 + $0x898] sm:$0xff]
        %v535 = vld [vmem:[%s203 + $0x8a0] sm:$0xff]
        %v536 = vld [vmem:[%s203 + $0x8a8] sm:$0xff]
        %v537 = vld [vmem:[%s203 + $0x8b0] sm:$0xff]
        %v538 = vld [vmem:[%s203 + $0x8b8] sm:$0xff]
        %v539 = vld [vmem:[%s203 + $0x8c0] sm:$0xff]
        %v540 = vld [vmem:[%s203 + $0x8c8] sm:$0xff]
        %v541 = vld [vmem:[%s203 + $0x8d0] sm:$0xff]
        %v542 = vld [vmem:[%s203 + $0x8d8] sm:$0xff]
        %v543 = vld [vmem:[%s203 + $0x8e0] sm:$0xff]
        %v544 = vld [vmem:[%s203 + $0x8e8] sm:$0xff]
        %v545 = vld [vmem:[%s203 + $0x8f0] sm:$0xff]
        %v546 = vld [vmem:[%s203 + $0x8f8] sm:$0xff]
        %v547 = vld [vmem:[%s1] sm:$0xff]
        %v548 = vld [vmem:[%s1 + $0x8] sm:$0xff]
        %v549 = vld [vmem:[%s1 + $0x10] sm:$0xff]
        %v550 = vld [vmem:[%s1 + $0x18] sm:$0xff]
        %v551 = vld [vmem:[%s1 + $0x20] sm:$0xff]
        %v552 = vld [vmem:[%s1 + $0x28] sm:$0xff]
        %v553 = vld [vmem:[%s1 + $0x30] sm:$0xff]
        %v554 = vld [vmem:[%s1 + $0x38] sm:$0xff]
        %v555 = vld [vmem:[%s1 + $0x40] sm:$0xff]
        %v556 = vld [vmem:[%s1 + $0x48] sm:$0xff]
        %v557 = vld [vmem:[%s1 + $0x50] sm:$0xff]
        %v558 = vld [vmem:[%s1 + $0x58] sm:$0xff]
        %v559 = vld [vmem:[%s1 + $0x60] sm:$0xff]
        %v560 = vld [vmem:[%s1 + $0x68] sm:$0xff]
        %v561 = vld [vmem:[%s1 + $0x70] sm:$0xff]
        %v562 = vld [vmem:[%s1 + $0x78] sm:$0xff]
        %v563 = vld [vmem:[%s1 + $0x80] sm:$0xff]
        %v564 = vld [vmem:[%s1 + $0x88] sm:$0xff]
        %v565 = vld [vmem:[%s1 + $0x90] sm:$0xff]
        %v566 = vld [vmem:[%s1 + $0x98] sm:$0xff]
        %v567 = vld [vmem:[%s1 + $0xa0] sm:$0xff]
        %v568 = vld [vmem:[%s1 + $0xa8] sm:$0xff]
        %v569 = vld [vmem:[%s1 + $0xb0] sm:$0xff]
        %v570 = vld [vmem:[%s1 + $0xb8] sm:$0xff]
        %v571 = vld [vmem:[%s1 + $0xc0] sm:$0xff]
        %v572 = vld [vmem:[%s1 + $0xc8] sm:$0xff]
        %v573 = vld [vmem:[%s1 + $0xd0] sm:$0xff]
        %v574 = vld [vmem:[%s1 + $0xd8] sm:$0xff]
        %v575 = vld [vmem:[%s1 + $0xe0] sm:$0xff]
        %v576 = vld [vmem:[%s1 + $0xe8] sm:$0xff]
        %v577 = vld [vmem:[%s1 + $0xf0] sm:$0xff]
        %v578 = vld [vmem:[%s1 + $0xf8] sm:$0xff]
        %v579 = vld [vmem:[%s1 + $0x100] sm:$0xff]
        %v580 = vld [vmem:[%s1 + $0x108] sm:$0xff]
        %v581 = vld [vmem:[%s1 + $0x110] sm:$0xff]
        %v582 = vld [vmem:[%s1 + $0x118] sm:$0xff]
        %v583 = vld [vmem:[%s1 + $0x120] sm:$0xff]
        %v584 = vld [vmem:[%s1 + $0x128] sm:$0xff]
        %v585 = vld [vmem:[%s1 + $0x130] sm:$0xff]
        %v586 = vld [vmem:[%s1 + $0x138] sm:$0xff]
        %v587 = vld [vmem:[%s1 + $0x140] sm:$0xff]
        %v588 = vld [vmem:[%s1 + $0x148] sm:$0xff]
        %v589 = vld [vmem:[%s1 + $0x150] sm:$0xff]
        %v590 = vld [vmem:[%s1 + $0x158] sm:$0xff]
        %v591 = vld [vmem:[%s1 + $0x160] sm:$0xff]
        %v592 = vld [vmem:[%s1 + $0x168] sm:$0xff]
        %v593 = vld [vmem:[%s1 + $0x170] sm:$0xff]
        %v594 = vld [vmem:[%s1 + $0x178] sm:$0xff]
        %v595 = vld [vmem:[%s1 + $0x180] sm:$0xff]
        %v596 = vld [vmem:[%s1 + $0x188] sm:$0xff]
        %v597 = vld [vmem:[%s1 + $0x190] sm:$0xff]
        %v598 = vld [vmem:[%s1 + $0x198] sm:$0xff]
        %v599 = vld [vmem:[%s1 + $0x1a0] sm:$0xff]
        %v600 = vld [vmem:[%s1 + $0x1a8] sm:$0xff]
        %v601 = vld [vmem:[%s1 + $0x1b0] sm:$0xff]
        %v602 = vld [vmem:[%s1 + $0x1b8] sm:$0xff]
        %v603 = vld [vmem:[%s1 + $0x1c0] sm:$0xff]
        %v604 = vld [vmem:[%s1 + $0x1c8] sm:$0xff]
        %v605 = vld [vmem:[%s1 + $0x1d0] sm:$0xff]
        %v606 = vld [vmem:[%s1 + $0x1d8] sm:$0xff]
        %v607 = vld [vmem:[%s1 + $0x1e0] sm:$0xff]
        %v608 = vld [vmem:[%s1 + $0x1e8] sm:$0xff]
        %v609 = vld [vmem:[%s1 + $0x1f0] sm:$0xff]
        %v610 = vld [vmem:[%s1 + $0x1f8] sm:$0xff]
        %v611 = vld [vmem:[%s1 + $0x200] sm:$0xff]
        %v612 = vld [vmem:[%s1 + $0x208] sm:$0xff]
        %v613 = vld [vmem:[%s1 + $0x210] sm:$0xff]
        %v614 = vld [vmem:[%s1 + $0x218] sm:$0xff]
        %v615 = vld [vmem:[%s1 + $0x220] sm:$0xff]
        %v616 = vld [vmem:[%s1 + $0x228] sm:$0xff]
        %v617 = vld [vmem:[%s1 + $0x230] sm:$0xff]
        %v618 = vld [vmem:[%s1 + $0x238] sm:$0xff]
        %v619 = vld [vmem:[%s1 + $0x240] sm:$0xff]
        %v620 = vld [vmem:[%s1 + $0x248] sm:$0xff]
        %v621 = vld [vmem:[%s1 + $0x250] sm:$0xff]
        %v622 = vld [vmem:[%s1 + $0x258] sm:$0xff]
        %v623 = vld [vmem:[%s1 + $0x260] sm:$0xff]
        %v624 = vld [vmem:[%s1 + $0x268] sm:$0xff]
        %v625 = vld [vmem:[%s1 + $0x270] sm:$0xff]
        %v626 = vld [vmem:[%s1 + $0x278] sm:$0xff]
        %v627 = vld [vmem:[%s1 + $0x280] sm:$0xff]
        %v628 = vld [vmem:[%s1 + $0x288] sm:$0xff]
        %v629 = vld [vmem:[%s1 + $0x290] sm:$0xff]
        %v630 = vld [vmem:[%s1 + $0x298] sm:$0xff]
        %v631 = vld [vmem:[%s1 + $0x2a0] sm:$0xff]
        %v632 = vld [vmem:[%s1 + $0x2a8] sm:$0xff]
        %v633 = vld [vmem:[%s1 + $0x2b0] sm:$0xff]
        %v634 = vld [vmem:[%s1 + $0x2b8] sm:$0xff]
        %v635 = vld [vmem:[%s1 + $0x2c0] sm:$0xff]
        %v636 = vld [vmem:[%s1 + $0x2c8] sm:$0xff]
        %v637 = vld [vmem:[%s1 + $0x2d0] sm:$0xff]
        %v638 = vld [vmem:[%s1 + $0x2d8] sm:$0xff]
        %v639 = vld [vmem:[%s1 + $0x2e0] sm:$0xff]
        %v640 = vld [vmem:[%s1 + $0x2e8] sm:$0xff]
        %v641 = vld [vmem:[%s1 + $0x2f0] sm:$0xff]
        %v642 = vld [vmem:[%s1 + $0x2f8] sm:$0xff]
        %v643 = vld [vmem:[%s1 + $0x300] sm:$0xff]
        %v644 = vld [vmem:[%s1 + $0x308] sm:$0xff]
        %v645 = vld [vmem:[%s1 + $0x310] sm:$0xff]
        %v646 = vld [vmem:[%s1 + $0x318] sm:$0xff]
        %v647 = vld [vmem:[%s1 + $0x320] sm:$0xff]
        %v648 = vld [vmem:[%s1 + $0x328] sm:$0xff]
        %v649 = vld [vmem:[%s1 + $0x330] sm:$0xff]
        %v650 = vld [vmem:[%s1 + $0x338] sm:$0xff]
        %v651 = vld [vmem:[%s1 + $0x340] sm:$0xff]
        %v652 = vld [vmem:[%s1 + $0x348] sm:$0xff]
        %v653 = vld [vmem:[%s1 + $0x350] sm:$0xff]
        %v654 = vld [vmem:[%s1 + $0x358] sm:$0xff]
        %v655 = vld [vmem:[%s1 + $0x360] sm:$0xff]
        %v656 = vld [vmem:[%s1 + $0x368] sm:$0xff]
        %v657 = vld [vmem:[%s1 + $0x370] sm:$0xff]
        %v658 = vld [vmem:[%s1 + $0x378] sm:$0xff]
        %v659 = vld [vmem:[%s1 + $0x380] sm:$0xff]
        %v660 = vld [vmem:[%s1 + $0x388] sm:$0xff]
        %v661 = vld [vmem:[%s1 + $0x390] sm:$0xff]
        %v662 = vld [vmem:[%s1 + $0x398] sm:$0xff]
        %v663 = vld [vmem:[%s1 + $0x3a0] sm:$0xff]
        %v664 = vld [vmem:[%s1 + $0x3a8] sm:$0xff]
        %v665 = vld [vmem:[%s1 + $0x3b0] sm:$0xff]
        %v666 = vld [vmem:[%s1 + $0x3b8] sm:$0xff]
        %v667 = vld [vmem:[%s1 + $0x3c0] sm:$0xff]
        %v668 = vld [vmem:[%s1 + $0x3c8] sm:$0xff]
        %v669 = vld [vmem:[%s1 + $0x3d0] sm:$0xff]
        %v670 = vld [vmem:[%s1 + $0x3d8] sm:$0xff]
        %v671 = vld [vmem:[%s1 + $0x3e0] sm:$0xff]
        %v672 = vld [vmem:[%s1 + $0x3e8] sm:$0xff]
        %v673 = vld [vmem:[%s1 + $0x3f0] sm:$0xff]
        %v674 = vld [vmem:[%s1 + $0x3f8] sm:$0xff]
        %v675 = vld [vmem:[%s1 + $0x400] sm:$0xff]
        %v676 = vld [vmem:[%s1 + $0x408] sm:$0xff]
        %v677 = vld [vmem:[%s1 + $0x410] sm:$0xff]
        %v678 = vld [vmem:[%s1 + $0x418] sm:$0xff]
        %v679 = vld [vmem:[%s1 + $0x420] sm:$0xff]
        %v680 = vld [vmem:[%s1 + $0x428] sm:$0xff]
        %v681 = vld [vmem:[%s1 + $0x430] sm:$0xff]
        %v682 = vld [vmem:[%s1 + $0x438] sm:$0xff]
        %v683 = vld [vmem:[%s1 + $0x440] sm:$0xff]
        %v684 = vld [vmem:[%s1 + $0x448] sm:$0xff]
        %v685 = vld [vmem:[%s1 + $0x450] sm:$0xff]
        %v686 = vld [vmem:[%s1 + $0x458] sm:$0xff]
        %v687 = vld [vmem:[%s1 + $0x460] sm:$0xff]
        %v688 = vld [vmem:[%s1 + $0x468] sm:$0xff]
        %v689 = vld [vmem:[%s1 + $0x470] sm:$0xff]
        %v690 = vld [vmem:[%s1 + $0x478] sm:$0xff]
        %v691 = vld [vmem:[%s1 + $0x480] sm:$0xff]
        %v692 = vld [vmem:[%s1 + $0x488] sm:$0xff]
        %v693 = vld [vmem:[%s1 + $0x490] sm:$0xff]
        %v694 = vld [vmem:[%s1 + $0x498] sm:$0xff]
        %v695 = vld [vmem:[%s1 + $0x4a0] sm:$0xff]
        %v696 = vld [vmem:[%s1 + $0x4a8] sm:$0xff]
        %v697 = vld [vmem:[%s1 + $0x4b0] sm:$0xff]
        %v698 = vld [vmem:[%s1 + $0x4b8] sm:$0xff]
        %v699 = vld [vmem:[%s1 + $0x4c0] sm:$0xff]
        %v700 = vld [vmem:[%s1 + $0x4c8] sm:$0xff]
        %v701 = vld [vmem:[%s1 + $0x4d0] sm:$0xff]
        %v702 = vld [vmem:[%s1 + $0x4d8] sm:$0xff]
        %v703 = vld [vmem:[%s1 + $0x4e0] sm:$0xff]
        %v704 = vld [vmem:[%s1 + $0x4e8] sm:$0xff]
        %v705 = vld [vmem:[%s1 + $0x4f0] sm:$0xff]
        %v706 = vld [vmem:[%s1 + $0x4f8] sm:$0xff]
        %v707 = vld [vmem:[%s1 + $0x500] sm:$0xff]
        %v708 = vld [vmem:[%s1 + $0x508] sm:$0xff]
        %v709 = vld [vmem:[%s1 + $0x510] sm:$0xff]
        %v710 = vld [vmem:[%s1 + $0x518] sm:$0xff]
        %v711 = vld [vmem:[%s1 + $0x520] sm:$0xff]
        %v712 = vld [vmem:[%s1 + $0x528] sm:$0xff]
        %v713 = vld [vmem:[%s1 + $0x530] sm:$0xff]
        %v714 = vld [vmem:[%s1 + $0x538] sm:$0xff]
        %v715 = vld [vmem:[%s1 + $0x540] sm:$0xff]
        %v716 = vld [vmem:[%s1 + $0x548] sm:$0xff]
        %v717 = vld [vmem:[%s1 + $0x550] sm:$0xff]
        %v718 = vld [vmem:[%s1 + $0x558] sm:$0xff]
        %v719 = vld [vmem:[%s1 + $0x560] sm:$0xff]
        %v720 = vld [vmem:[%s1 + $0x568] sm:$0xff]
        %v721 = vld [vmem:[%s1 + $0x570] sm:$0xff]
        %v722 = vld [vmem:[%s1 + $0x578] sm:$0xff]
        %v723 = vld [vmem:[%s1 + $0x580] sm:$0xff]
        %v724 = vld [vmem:[%s1 + $0x588] sm:$0xff]
        %v725 = vld [vmem:[%s1 + $0x590] sm:$0xff]
        %v726 = vld [vmem:[%s1 + $0x598] sm:$0xff]
        %v727 = vld [vmem:[%s1 + $0x5a0] sm:$0xff]
        %v728 = vld [vmem:[%s1 + $0x5a8] sm:$0xff]
        %v729 = vld [vmem:[%s1 + $0x5b0] sm:$0xff]
        %v730 = vld [vmem:[%s1 + $0x5b8] sm:$0xff]
        %v731 = vld [vmem:[%s1 + $0x5c0] sm:$0xff]
        %v732 = vld [vmem:[%s1 + $0x5c8] sm:$0xff]
        %v733 = vld [vmem:[%s1 + $0x5d0] sm:$0xff]
        %v734 = vld [vmem:[%s1 + $0x5d8] sm:$0xff]
        %v735 = vld [vmem:[%s1 + $0x5e0] sm:$0xff]
        %v736 = vld [vmem:[%s1 + $0x5e8] sm:$0xff]
        %v737 = vld [vmem:[%s1 + $0x5f0] sm:$0xff]
        %v738 = vld [vmem:[%s1 + $0x5f8] sm:$0xff]
        %739 = vmatprep.subr.mxu0 %v548
        %740 = vmatpush1.msra.mxu0 %v547
        %741 = vmatprep.subr.mxu0 %v550
        %742 = vmatpush1.msra.mxu0 %v549
        %743 = vmatprep.subr.mxu0 %v552
        %744 = vmatpush1.msra.mxu0 %v551
        %745 = vmatprep.subr.mxu0 %v554
        %746 = vmatpush1.msra.mxu0 %v553
        %747 = vmatprep.subr.mxu0 %v556
        %748 = vmatpush1.msra.mxu0 %v555
        %749 = vmatprep.subr.mxu0 %v558
        %750 = vmatpush1.msra.mxu0 %v557
        %751 = vmatprep.subr.mxu0 %v560
        %752 = vmatpush1.msra.mxu0 %v559
        %753 = vmatprep.subr.mxu0 %v562
        %754 = vmatpush1.msra.mxu0 %v561
        %755 = vmatprep.subr.mxu0 %v564
        %756 = vmatpush1.msra.mxu0 %v563
        %757 = vmatprep.subr.mxu0 %v566
        %758 = vmatpush1.msra.mxu0 %v565
        %759 = vmatprep.subr.mxu0 %v568
        %760 = vmatpush1.msra.mxu0 %v567
        %761 = vmatprep.subr.mxu0 %v570
        %762 = vmatpush1.msra.mxu0 %v569
        %763 = vmatprep.subr.mxu0 %v572
        %764 = vmatpush1.msra.mxu0 %v571
        %765 = vmatprep.subr.mxu0 %v574
        %766 = vmatpush1.msra.mxu0 %v573
        %767 = vmatprep.subr.mxu0 %v576
        %768 = vmatpush1.msra.mxu0 %v575
        %769 = vmatprep.subr.mxu0 %v578
        %770 = vmatpush1.msra.mxu0 %v577
        %771 = vmatprep.subr.mxu0 %v580
        %772 = vmatpush1.msra.mxu0 %v579
        %773 = vmatprep.subr.mxu0 %v582
        %774 = vmatpush1.msra.mxu0 %v581
        %775 = vmatprep.subr.mxu0 %v584
        %776 = vmatpush1.msra.mxu0 %v583
        %777 = vmatprep.subr.mxu0 %v586
        %778 = vmatpush1.msra.mxu0 %v585
        %779 = vmatprep.subr.mxu0 %v588
        %780 = vmatpush1.msra.mxu0 %v587
        %781 = vmatprep.subr.mxu0 %v590
        %782 = vmatpush1.msra.mxu0 %v589
        %783 = vmatprep.subr.mxu0 %v592
        %784 = vmatpush1.msra.mxu0 %v591
        %785 = vmatprep.subr.mxu0 %v594
        %786 = vmatpush1.msra.mxu0 %v593
        %787 = vmatprep.subr.mxu0 %v596
        %788 = vmatpush1.msra.mxu0 %v595
        %789 = vmatprep.subr.mxu0 %v598
        %790 = vmatpush1.msra.mxu0 %v597
        %791 = vmatprep.subr.mxu0 %v600
        %792 = vmatpush1.msra.mxu0 %v599
        %793 = vmatprep.subr.mxu0 %v602
        %794 = vmatpush1.msra.mxu0 %v601
        %795 = vmatprep.subr.mxu0 %v604
        %796 = vmatpush1.msra.mxu0 %v603
        %797 = vmatprep.subr.mxu0 %v606
        %798 = vmatpush1.msra.mxu0 %v605
        %799 = vmatprep.subr.mxu0 %v608
        %800 = vmatpush1.msra.mxu0 %v607
        %801 = vmatprep.subr.mxu0 %v610
        %802 = vmatpush1.msra.mxu0 %v609
        %803 = vmatprep.mubr.f32.mxu0 %v260
        %804 = vmatmul.mubr.f32.gmra.mrb[0].mxu0 %v259
        %v805 = vpop.f32.mrb[0].mxu0
        %v806 = vadd.f32 0.0, %v805
        %v807 = vpop.f32.mrb[0].mxu0
        %v808 = vadd.f32 0.0, %v807
        %809 = vmatprep.mubr.f32.mxu0 %v266
        %810 = vmatmul.mubr.f32.gmra.mrb[0].mxu0 %v265
        %v811 = vpop.f32.mrb[0].mxu0
        %v812 = vadd.f32 0.0, %v811
        %v813 = vpop.f32.mrb[0].mxu0
        %v814 = vadd.f32 0.0, %v813
        %815 = vmatprep.mubr.f32.mxu0 %v272
        %816 = vmatmul.mubr.f32.gmra.mrb[0].mxu0 %v271
        %v817 = vpop.f32.mrb[0].mxu0
        %v818 = vadd.f32 0.0, %v817
        %v819 = vpop.f32.mrb[0].mxu0
        %v820 = vadd.f32 0.0, %v819
        %821 = vmatprep.mubr.f32.mxu0 %v278
        %822 = vmatmul.mubr.f32.gmra.mrb[0].mxu0 %v277
        %v823 = vpop.f32.mrb[0].mxu0
        %v824 = vadd.f32 0.0, %v823
        %v825 = vpop.f32.mrb[0].mxu0
        %v826 = vadd.f32 0.0, %v825
        %827 = vmatprep.mubr.f32.mxu0 %v284
        %828 = vmatmul.mubr.f32.gmra.mrb[0].mxu0 %v283
        %v829 = vpop.f32.mrb[0].mxu0
        %v830 = vadd.f32 0.0, %v829
        %v831 = vpop.f32.mrb[0].mxu0
        %v832 = vadd.f32 0.0, %v831
        %833 = vmatprep.mubr.f32.mxu0 %v290
        %834 = vmatmul.mubr.f32.gmra.mrb[0].mxu0 %v289
        %v835 = vpop.f32.mrb[0].mxu0
        %v836 = vadd.f32 0.0, %v835
        %v837 = vpop.f32.mrb[0].mxu0
        %v838 = vadd.f32 0.0, %v837
        %839 = vmatprep.mubr.f32.mxu0 %v296
        %840 = vmatmul.mubr.f32.gmra.mrb[0].mxu0 %v295
        %v841 = vpop.f32.mrb[0].mxu0
        %v842 = vadd.f32 0.0, %v841
        %v843 = vpop.f32.mrb[0].mxu0
        %v844 = vadd.f32 0.0, %v843
        %845 = vmatprep.mubr.f32.mxu0 %v302
        %846 = vmatmul.mubr.f32.gmra.mrb[0].mxu0 %v301
        %v847 = vpop.f32.mrb[0].mxu0
        %v848 = vadd.f32 0.0, %v847
        %v849 = vpop.f32.mrb[0].mxu0
        %v850 = vadd.f32 0.0, %v849
        %851 = vmatprep.mubr.f32.mxu0 %v308
        %852 = vmatmul.mubr.f32.gmra.mrb[0].mxu0 %v307
        %v853 = vpop.f32.mrb[0].mxu0
        %v854 = vadd.f32 0.0, %v853
        %v855 = vpop.f32.mrb[0].mxu0
        %v856 = vadd.f32 0.0, %v855
        %857 = vmatprep.mubr.f32.mxu0 %v314
        %858 = vmatmul.mubr.f32.gmra.mrb[0].mxu0 %v313
        %v859 = vpop.f32.mrb[0].mxu0
        %v860 = vadd.f32 0.0, %v859
        %v861 = vpop.f32.mrb[0].mxu0
        %v862 = vadd.f32 0.0, %v861
        %863 = vmatprep.mubr.f32.mxu0 %v320
        %864 = vmatmul.mubr.f32.gmra.mrb[0].mxu0 %v319
        %v865 = vpop.f32.mrb[0].mxu0
        %v866 = vadd.f32 0.0, %v865
        %v867 = vpop.f32.mrb[0].mxu0
        %v868 = vadd.f32 0.0, %v867
        %869 = vmatprep.mubr.f32.mxu0 %v326
        %870 = vmatmul.mubr.f32.gmra.mrb[0].mxu0 %v325
        %v871 = vpop.f32.mrb[0].mxu0
        %v872 = vadd.f32 0.0, %v871
        %v873 = vpop.f32.mrb[0].mxu0
        %v874 = vadd.f32 0.0, %v873
        %875 = vmatprep.mubr.f32.mxu0 %v332
        %876 = vmatmul.mubr.f32.gmra.mrb[0].mxu0 %v331
        %v877 = vpop.f32.mrb[0].mxu0
        %v878 = vadd.f32 0.0, %v877
        %v879 = vpop.f32.mrb[0].mxu0
        %v880 = vadd.f32 0.0, %v879
        %881 = vmatprep.mubr.f32.mxu0 %v338
        %882 = vmatmul.mubr.f32.gmra.mrb[0].mxu0 %v337
        %v883 = vpop.f32.mrb[0].mxu0
        %v884 = vadd.f32 0.0, %v883
        %v885 = vpop.f32.mrb[0].mxu0
        %v886 = vadd.f32 0.0, %v885
        %887 = vmatprep.mubr.f32.mxu0 %v344
        %888 = vmatmul.mubr.f32.gmra.mrb[0].mxu0 %v343
        %v889 = vpop.f32.mrb[0].mxu0
        %v890 = vadd.f32 0.0, %v889
        %v891 = vpop.f32.mrb[0].mxu0
        %v892 = vadd.f32 0.0, %v891
        %893 = vmatprep.mubr.f32.mxu0 %v350
        %894 = vmatmul.mubr.f32.gmra.mrb[0].mxu0 %v349
        %v895 = vpop.f32.mrb[0].mxu0
        %v896 = vadd.f32 0.0, %v895
        %v897 = vpop.f32.mrb[0].mxu0
        %v898 = vadd.f32 0.0, %v897
        %899 = vmatprep.mubr.f32.mxu0 %v356
        %900 = vmatmul.mubr.f32.gmra.mrb[0].mxu0 %v355
        %v901 = vpop.f32.mrb[0].mxu0
        %v902 = vadd.f32 0.0, %v901
        %v903 = vpop.f32.mrb[0].mxu0
        %v904 = vadd.f32 0.0, %v903
        %905 = vmatprep.mubr.f32.mxu0 %v362
        %906 = vmatmul.mubr.f32.gmra.mrb[0].mxu0 %v361
        %v907 = vpop.f32.mrb[0].mxu0
        %v908 = vadd.f32 0.0, %v907
        %v909 = vpop.f32.mrb[0].mxu0
        %v910 = vadd.f32 0.0, %v909
        %911 = vmatprep.mubr.f32.mxu0 %v368
        %912 = vmatmul.mubr.f32.gmra.mrb[0].mxu0 %v367
        %v913 = vpop.f32.mrb[0].mxu0
        %v914 = vadd.f32 0.0, %v913
        %v915 = vpop.f32.mrb[0].mxu0
        %v916 = vadd.f32 0.0, %v915
        %917 = vmatprep.mubr.f32.mxu0 %v374
        %918 = vmatmul.mubr.f32.gmra.mrb[0].mxu0 %v373
        %v919 = vpop.f32.mrb[0].mxu0
        %v920 = vadd.f32 0.0, %v919
        %v921 = vpop.f32.mrb[0].mxu0
        %v922 = vadd.f32 0.0, %v921
        %923 = vmatprep.mubr.f32.mxu0 %v380
        %924 = vmatmul.mubr.f32.gmra.mrb[0].mxu0 %v379
        %v925 = vpop.f32.mrb[0].mxu0
        %v926 = vadd.f32 0.0, %v925
        %v927 = vpop.f32.mrb[0].mxu0
        %v928 = vadd.f32 0.0, %v927
        %929 = vmatprep.mubr.f32.mxu0 %v386
        %930 = vmatmul.mubr.f32.gmra.mrb[0].mxu0 %v385
        %v931 = vpop.f32.mrb[0].mxu0
        %v932 = vadd.f32 0.0, %v931
        %v933 = vpop.f32.mrb[0].mxu0
        %v934 = vadd.f32 0.0, %v933
        %935 = vmatprep.mubr.f32.mxu0 %v392
        %936 = vmatmul.mubr.f32.gmra.mrb[0].mxu0 %v391
        %v937 = vpop.f32.mrb[0].mxu0
        %v938 = vadd.f32 0.0, %v937
        %v939 = vpop.f32.mrb[0].mxu0
        %v940 = vadd.f32 0.0, %v939
        %941 = vmatprep.mubr.f32.mxu0 %v398
        %942 = vmatmul.mubr.f32.gmra.mrb[0].mxu0 %v397
        %v943 = vpop.f32.mrb[0].mxu0
        %v944 = vadd.f32 0.0, %v943
        %v945 = vpop.f32.mrb[0].mxu0
        %v946 = vadd.f32 0.0, %v945
        %947 = vmatprep.mubr.f32.mxu0 %v404
        %948 = vmatmul.mubr.f32.gmra.mrb[0].mxu0 %v403
        %v949 = vpop.f32.mrb[0].mxu0
        %v950 = vadd.f32 0.0, %v949
        %v951 = vpop.f32.mrb[0].mxu0
        %v952 = vadd.f32 0.0, %v951
        %953 = vmatprep.mubr.f32.mxu0 %v410
        %954 = vmatmul.mubr.f32.gmra.mrb[0].mxu0 %v409
        %v955 = vpop.f32.mrb[0].mxu0
        %v956 = vadd.f32 0.0, %v955
        %v957 = vpop.f32.mrb[0].mxu0
        %v958 = vadd.f32 0.0, %v957
        %959 = vmatprep.mubr.f32.mxu0 %v416
        %960 = vmatmul.mubr.f32.gmra.mrb[0].mxu0 %v415
        %v961 = vpop.f32.mrb[0].mxu0
        %v962 = vadd.f32 0.0, %v961
        %v963 = vpop.f32.mrb[0].mxu0
        %v964 = vadd.f32 0.0, %v963
        %965 = vmatprep.mubr.f32.mxu0 %v422
        %966 = vmatmul.mubr.f32.gmra.mrb[0].mxu0 %v421
        %v967 = vpop.f32.mrb[0].mxu0
        %v968 = vadd.f32 0.0, %v967
        %v969 = vpop.f32.mrb[0].mxu0
        %v970 = vadd.f32 0.0, %v969
        %971 = vmatprep.mubr.f32.mxu0 %v428
        %972 = vmatmul.mubr.f32.gmra.mrb[0].mxu0 %v427
        %v973 = vpop.f32.mrb[0].mxu0
        %v974 = vadd.f32 0.0, %v973
        %v975 = vpop.f32.mrb[0].mxu0
        %v976 = vadd.f32 0.0, %v975
        %977 = vmatprep.mubr.f32.mxu0 %v434
        %978 = vmatmul.mubr.f32.gmra.mrb[0].mxu0 %v433
        %v979 = vpop.f32.mrb[0].mxu0
        %v980 = vadd.f32 0.0, %v979
        %v981 = vpop.f32.mrb[0].mxu0
        %v982 = vadd.f32 0.0, %v981
        %983 = vmatprep.mubr.f32.mxu0 %v440
        %984 = vmatmul.mubr.f32.gmra.mrb[0].mxu0 %v439
        %v985 = vpop.f32.mrb[0].mxu0
        %v986 = vadd.f32 0.0, %v985
        %v987 = vpop.f32.mrb[0].mxu0
        %v988 = vadd.f32 0.0, %v987
        %989 = vmatprep.mubr.f32.mxu0 %v446
        %990 = vmatmul.mubr.f32.gmra.mrb[0].mxu0 %v445
        %v991 = vpop.f32.mrb[0].mxu0
        %v992 = vadd.f32 0.0, %v991
        %v993 = vpop.f32.mrb[0].mxu0
        %v994 = vadd.f32 0.0, %v993
        %995 = vmatprep.mubr.f32.mxu0 %v452
        %996 = vmatmul.mubr.f32.gmra.mrb[0].mxu0 %v451
        %v997 = vpop.f32.mrb[0].mxu0
        %v998 = vadd.f32 0.0, %v997
        %v999 = vpop.f32.mrb[0].mxu0
        %v1000 = vadd.f32 0.0, %v999
        %1001 = vmatprep.mubr.f32.mxu0 %v458
        %1002 = vmatmul.mubr.f32.gmra.mrb[0].mxu0 %v457
        %v1003 = vpop.f32.mrb[0].mxu0
        %v1004 = vadd.f32 0.0, %v1003
        %v1005 = vpop.f32.mrb[0].mxu0
        %v1006 = vadd.f32 0.0, %v1005
        %1007 = vmatprep.mubr.f32.mxu0 %v464
        %1008 = vmatmul.mubr.f32.gmra.mrb[0].mxu0 %v463
        %v1009 = vpop.f32.mrb[0].mxu0
        %v1010 = vadd.f32 0.0, %v1009
        %v1011 = vpop.f32.mrb[0].mxu0
        %v1012 = vadd.f32 0.0, %v1011
        %1013 = vmatprep.mubr.f32.mxu0 %v470
        %1014 = vmatmul.mubr.f32.gmra.mrb[0].mxu0 %v469
        %v1015 = vpop.f32.mrb[0].mxu0
        %v1016 = vadd.f32 0.0, %v1015
        %v1017 = vpop.f32.mrb[0].mxu0
        %v1018 = vadd.f32 0.0, %v1017
        %1019 = vmatprep.mubr.f32.mxu0 %v476
        %1020 = vmatmul.mubr.f32.gmra.mrb[0].mxu0 %v475
        %v1021 = vpop.f32.mrb[0].mxu0
        %v1022 = vadd.f32 0.0, %v1021
        %v1023 = vpop.f32.mrb[0].mxu0
        %v1024 = vadd.f32 0.0, %v1023
        %1025 = vmatprep.mubr.f32.mxu0 %v482
        %1026 = vmatmul.mubr.f32.gmra.mrb[0].mxu0 %v481
        %v1027 = vpop.f32.mrb[0].mxu0
        %v1028 = vadd.f32 0.0, %v1027
        %v1029 = vpop.f32.mrb[0].mxu0
        %v1030 = vadd.f32 0.0, %v1029
        %1031 = vmatprep.mubr.f32.mxu0 %v488
        %1032 = vmatmul.mubr.f32.gmra.mrb[0].mxu0 %v487
        %v1033 = vpop.f32.mrb[0].mxu0
        %v1034 = vadd.f32 0.0, %v1033
        %v1035 = vpop.f32.mrb[0].mxu0
        %v1036 = vadd.f32 0.0, %v1035
        %1037 = vmatprep.mubr.f32.mxu0 %v494
        %1038 = vmatmul.mubr.f32.gmra.mrb[0].mxu0 %v493
        %v1039 = vpop.f32.mrb[0].mxu0
        %v1040 = vadd.f32 0.0, %v1039
        %v1041 = vpop.f32.mrb[0].mxu0
        %v1042 = vadd.f32 0.0, %v1041
        %1043 = vmatprep.mubr.f32.mxu0 %v500
        %1044 = vmatmul.mubr.f32.gmra.mrb[0].mxu0 %v499
        %v1045 = vpop.f32.mrb[0].mxu0
        %v1046 = vadd.f32 0.0, %v1045
        %v1047 = vpop.f32.mrb[0].mxu0
        %v1048 = vadd.f32 0.0, %v1047
        %1049 = vmatprep.mubr.f32.mxu0 %v506
        %1050 = vmatmul.mubr.f32.gmra.mrb[0].mxu0 %v505
        %v1051 = vpop.f32.mrb[0].mxu0
        %v1052 = vadd.f32 0.0, %v1051
        %v1053 = vpop.f32.mrb[0].mxu0
        %v1054 = vadd.f32 0.0, %v1053
        %1055 = vmatprep.mubr.f32.mxu0 %v512
        %1056 = vmatmul.mubr.f32.gmra.mrb[0].mxu0 %v511
        %v1057 = vpop.f32.mrb[0].mxu0
        %v1058 = vadd.f32 0.0, %v1057
        %v1059 = vpop.f32.mrb[0].mxu0
        %v1060 = vadd.f32 0.0, %v1059
        %1061 = vmatprep.mubr.f32.mxu0 %v518
        %1062 = vmatmul.mubr.f32.gmra.mrb[0].mxu0 %v517
        %v1063 = vpop.f32.mrb[0].mxu0
        %v1064 = vadd.f32 0.0, %v1063
        %v1065 = vpop.f32.mrb[0].mxu0
        %v1066 = vadd.f32 0.0, %v1065
        %1067 = vmatprep.mubr.f32.mxu0 %v524
        %1068 = vmatmul.mubr.f32.gmra.mrb[0].mxu0 %v523
        %v1069 = vpop.f32.mrb[0].mxu0
        %v1070 = vadd.f32 0.0, %v1069
        %v1071 = vpop.f32.mrb[0].mxu0
        %v1072 = vadd.f32 0.0, %v1071
        %1073 = vmatprep.mubr.f32.mxu0 %v530
        %1074 = vmatmul.mubr.f32.gmra.mrb[0].mxu0 %v529
        %v1075 = vpop.f32.mrb[0].mxu0
        %v1076 = vadd.f32 0.0, %v1075
        %v1077 = vpop.f32.mrb[0].mxu0
        %v1078 = vadd.f32 0.0, %v1077
        %1079 = vmatprep.mubr.f32.mxu0 %v536
        %1080 = vmatmul.mubr.f32.gmra.mrb[0].mxu0 %v535
        %v1081 = vpop.f32.mrb[0].mxu0
        %v1082 = vadd.f32 0.0, %v1081
        %v1083 = vpop.f32.mrb[0].mxu0
        %v1084 = vadd.f32 0.0, %v1083
        %1085 = vmatprep.mubr.f32.mxu0 %v542
        %1086 = vmatmul.mubr.f32.gmra.mrb[0].mxu0 %v541
        %v1087 = vpop.f32.mrb[0].mxu0
        %v1088 = vadd.f32 0.0, %v1087
        %v1089 = vpop.f32.mrb[0].mxu0
        %v1090 = vadd.f32 0.0, %v1089
        %1091 = vdwg.mxu0
        %1092 = vmatprep.subr.mxu0 %v612
        %1093 = vmatpush1.msra.mxu0 %v611
        %1094 = vmatprep.subr.mxu0 %v614
        %1095 = vmatpush1.msra.mxu0 %v613
        %1096 = vmatprep.subr.mxu0 %v616
        %1097 = vmatpush1.msra.mxu0 %v615
        %1098 = vmatprep.subr.mxu0 %v618
        %1099 = vmatpush1.msra.mxu0 %v617
        %1100 = vmatprep.subr.mxu0 %v620
        %1101 = vmatpush1.msra.mxu0 %v619
        %1102 = vmatprep.subr.mxu0 %v622
        %1103 = vmatpush1.msra.mxu0 %v621
        %1104 = vmatprep.subr.mxu0 %v624
        %1105 = vmatpush1.msra.mxu0 %v623
        %1106 = vmatprep.subr.mxu0 %v626
        %1107 = vmatpush1.msra.mxu0 %v625
        %1108 = vmatprep.subr.mxu0 %v628
        %1109 = vmatpush1.msra.mxu0 %v627
        %1110 = vmatprep.subr.mxu0 %v630
        %1111 = vmatpush1.msra.mxu0 %v629
        %1112 = vmatprep.subr.mxu0 %v632
        %1113 = vmatpush1.msra.mxu0 %v631
        %1114 = vmatprep.subr.mxu0 %v634
        %1115 = vmatpush1.msra.mxu0 %v633
        %1116 = vmatprep.subr.mxu0 %v636
        %1117 = vmatpush1.msra.mxu0 %v635
        %1118 = vmatprep.subr.mxu0 %v638
        %1119 = vmatpush1.msra.mxu0 %v637
        %1120 = vmatprep.subr.mxu0 %v640
        %1121 = vmatpush1.msra.mxu0 %v639
        %1122 = vmatprep.subr.mxu0 %v642
        %1123 = vmatpush1.msra.mxu0 %v641
        %1124 = vmatprep.subr.mxu0 %v644
        %1125 = vmatpush1.msra.mxu0 %v643
        %1126 = vmatprep.subr.mxu0 %v646
        %1127 = vmatpush1.msra.mxu0 %v645
        %1128 = vmatprep.subr.mxu0 %v648
        %1129 = vmatpush1.msra.mxu0 %v647
        %1130 = vmatprep.subr.mxu0 %v650
        %1131 = vmatpush1.msra.mxu0 %v649
        %1132 = vmatprep.subr.mxu0 %v652
        %1133 = vmatpush1.msra.mxu0 %v651
        %1134 = vmatprep.subr.mxu0 %v654
        %1135 = vmatpush1.msra.mxu0 %v653
        %1136 = vmatprep.subr.mxu0 %v656
        %1137 = vmatpush1.msra.mxu0 %v655
        %1138 = vmatprep.subr.mxu0 %v658
        %1139 = vmatpush1.msra.mxu0 %v657
        %1140 = vmatprep.subr.mxu0 %v660
        %1141 = vmatpush1.msra.mxu0 %v659
        %1142 = vmatprep.subr.mxu0 %v662
        %1143 = vmatpush1.msra.mxu0 %v661
        %1144 = vmatprep.subr.mxu0 %v664
        %1145 = vmatpush1.msra.mxu0 %v663
        %1146 = vmatprep.subr.mxu0 %v666
        %1147 = vmatpush1.msra.mxu0 %v665
        %1148 = vmatprep.subr.mxu0 %v668
        %1149 = vmatpush1.msra.mxu0 %v667
        %1150 = vmatprep.subr.mxu0 %v670
        %1151 = vmatpush1.msra.mxu0 %v669
        %1152 = vmatprep.subr.mxu0 %v672
        %1153 = vmatpush1.msra.mxu0 %v671
        %1154 = vmatprep.subr.mxu0 %v674
        %1155 = vmatpush1.msra.mxu0 %v673
        %1156 = vmatprep.mubr.f32.mxu0 %v262
        %1157 = vmatmul.mubr.f32.gmra.mrb[0].mxu0 %v261
        %v1158 = vpop.f32.mrb[0].mxu0
        %v1159 = vadd.f32 %v806, %v1158
        %v1160 = vpop.f32.mrb[0].mxu0
        %v1161 = vadd.f32 %v808, %v1160
        %1162 = vmatprep.mubr.f32.mxu0 %v268
        %1163 = vmatmul.mubr.f32.gmra.mrb[0].mxu0 %v267
        %v1164 = vpop.f32.mrb[0].mxu0
        %v1165 = vadd.f32 %v812, %v1164
        %v1166 = vpop.f32.mrb[0].mxu0
        %v1167 = vadd.f32 %v814, %v1166
        %1168 = vmatprep.mubr.f32.mxu0 %v274
        %1169 = vmatmul.mubr.f32.gmra.mrb[0].mxu0 %v273
        %v1170 = vpop.f32.mrb[0].mxu0
        %v1171 = vadd.f32 %v818, %v1170
        %v1172 = vpop.f32.mrb[0].mxu0
        %v1173 = vadd.f32 %v820, %v1172
        %1174 = vmatprep.mubr.f32.mxu0 %v280
        %1175 = vmatmul.mubr.f32.gmra.mrb[0].mxu0 %v279
        %v1176 = vpop.f32.mrb[0].mxu0
        %v1177 = vadd.f32 %v824, %v1176
        %v1178 = vpop.f32.mrb[0].mxu0
        %v1179 = vadd.f32 %v826, %v1178
        %1180 = vmatprep.mubr.f32.mxu0 %v286
        %1181 = vmatmul.mubr.f32.gmra.mrb[0].mxu0 %v285
        %v1182 = vpop.f32.mrb[0].mxu0
        %v1183 = vadd.f32 %v830, %v1182
        %v1184 = vpop.f32.mrb[0].mxu0
        %v1185 = vadd.f32 %v832, %v1184
        %1186 = vmatprep.mubr.f32.mxu0 %v292
        %1187 = vmatmul.mubr.f32.gmra.mrb[0].mxu0 %v291
        %v1188 = vpop.f32.mrb[0].mxu0
        %v1189 = vadd.f32 %v836, %v1188
        %v1190 = vpop.f32.mrb[0].mxu0
        %v1191 = vadd.f32 %v838, %v1190
        %1192 = vmatprep.mubr.f32.mxu0 %v298
        %1193 = vmatmul.mubr.f32.gmra.mrb[0].mxu0 %v297
        %v1194 = vpop.f32.mrb[0].mxu0
        %v1195 = vadd.f32 %v842, %v1194
        %v1196 = vpop.f32.mrb[0].mxu0
        %v1197 = vadd.f32 %v844, %v1196
        %1198 = vmatprep.mubr.f32.mxu0 %v304
        %1199 = vmatmul.mubr.f32.gmra.mrb[0].mxu0 %v303
        %v1200 = vpop.f32.mrb[0].mxu0
        %v1201 = vadd.f32 %v848, %v1200
        %v1202 = vpop.f32.mrb[0].mxu0
        %v1203 = vadd.f32 %v850, %v1202
        %1204 = vmatprep.mubr.f32.mxu0 %v310
        %1205 = vmatmul.mubr.f32.gmra.mrb[0].mxu0 %v309
        %v1206 = vpop.f32.mrb[0].mxu0
        %v1207 = vadd.f32 %v854, %v1206
        %v1208 = vpop.f32.mrb[0].mxu0
        %v1209 = vadd.f32 %v856, %v1208
        %1210 = vmatprep.mubr.f32.mxu0 %v316
        %1211 = vmatmul.mubr.f32.gmra.mrb[0].mxu0 %v315
        %v1212 = vpop.f32.mrb[0].mxu0
        %v1213 = vadd.f32 %v860, %v1212
        %v1214 = vpop.f32.mrb[0].mxu0
        %v1215 = vadd.f32 %v862, %v1214
        %1216 = vmatprep.mubr.f32.mxu0 %v322
        %1217 = vmatmul.mubr.f32.gmra.mrb[0].mxu0 %v321
        %v1218 = vpop.f32.mrb[0].mxu0
        %v1219 = vadd.f32 %v866, %v1218
        %v1220 = vpop.f32.mrb[0].mxu0
        %v1221 = vadd.f32 %v868, %v1220
        %1222 = vmatprep.mubr.f32.mxu0 %v328
        %1223 = vmatmul.mubr.f32.gmra.mrb[0].mxu0 %v327
        %v1224 = vpop.f32.mrb[0].mxu0
        %v1225 = vadd.f32 %v872, %v1224
        %v1226 = vpop.f32.mrb[0].mxu0
        %v1227 = vadd.f32 %v874, %v1226
        %1228 = vmatprep.mubr.f32.mxu0 %v334
        %1229 = vmatmul.mubr.f32.gmra.mrb[0].mxu0 %v333
        %v1230 = vpop.f32.mrb[0].mxu0
        %v1231 = vadd.f32 %v878, %v1230
        %v1232 = vpop.f32.mrb[0].mxu0
        %v1233 = vadd.f32 %v880, %v1232
        %1234 = vmatprep.mubr.f32.mxu0 %v340
        %1235 = vmatmul.mubr.f32.gmra.mrb[0].mxu0 %v339
        %v1236 = vpop.f32.mrb[0].mxu0
        %v1237 = vadd.f32 %v884, %v1236
        %v1238 = vpop.f32.mrb[0].mxu0
        %v1239 = vadd.f32 %v886, %v1238
        %1240 = vmatprep.mubr.f32.mxu0 %v346
        %1241 = vmatmul.mubr.f32.gmra.mrb[0].mxu0 %v345
        %v1242 = vpop.f32.mrb[0].mxu0
        %v1243 = vadd.f32 %v890, %v1242
        %v1244 = vpop.f32.mrb[0].mxu0
        %v1245 = vadd.f32 %v892, %v1244
        %1246 = vmatprep.mubr.f32.mxu0 %v352
        %1247 = vmatmul.mubr.f32.gmra.mrb[0].mxu0 %v351
        %v1248 = vpop.f32.mrb[0].mxu0
        %v1249 = vadd.f32 %v896, %v1248
        %v1250 = vpop.f32.mrb[0].mxu0
        %v1251 = vadd.f32 %v898, %v1250
        %1252 = vmatprep.mubr.f32.mxu0 %v358
        %1253 = vmatmul.mubr.f32.gmra.mrb[0].mxu0 %v357
        %v1254 = vpop.f32.mrb[0].mxu0
        %v1255 = vadd.f32 %v902, %v1254
        %v1256 = vpop.f32.mrb[0].mxu0
        %v1257 = vadd.f32 %v904, %v1256
        %1258 = vmatprep.mubr.f32.mxu0 %v364
        %1259 = vmatmul.mubr.f32.gmra.mrb[0].mxu0 %v363
        %v1260 = vpop.f32.mrb[0].mxu0
        %v1261 = vadd.f32 %v908, %v1260
        %v1262 = vpop.f32.mrb[0].mxu0
        %v1263 = vadd.f32 %v910, %v1262
        %1264 = vmatprep.mubr.f32.mxu0 %v370
        %1265 = vmatmul.mubr.f32.gmra.mrb[0].mxu0 %v369
        %v1266 = vpop.f32.mrb[0].mxu0
        %v1267 = vadd.f32 %v914, %v1266
        %v1268 = vpop.f32.mrb[0].mxu0
        %v1269 = vadd.f32 %v916, %v1268
        %1270 = vmatprep.mubr.f32.mxu0 %v376
        %1271 = vmatmul.mubr.f32.gmra.mrb[0].mxu0 %v375
        %v1272 = vpop.f32.mrb[0].mxu0
        %v1273 = vadd.f32 %v920, %v1272
        %v1274 = vpop.f32.mrb[0].mxu0
        %v1275 = vadd.f32 %v922, %v1274
        %1276 = vmatprep.mubr.f32.mxu0 %v382
        %1277 = vmatmul.mubr.f32.gmra.mrb[0].mxu0 %v381
        %v1278 = vpop.f32.mrb[0].mxu0
        %v1279 = vadd.f32 %v926, %v1278
        %v1280 = vpop.f32.mrb[0].mxu0
        %v1281 = vadd.f32 %v928, %v1280
        %1282 = vmatprep.mubr.f32.mxu0 %v388
        %1283 = vmatmul.mubr.f32.gmra.mrb[0].mxu0 %v387
        %v1284 = vpop.f32.mrb[0].mxu0
        %v1285 = vadd.f32 %v932, %v1284
        %v1286 = vpop.f32.mrb[0].mxu0
        %v1287 = vadd.f32 %v934, %v1286
        %1288 = vmatprep.mubr.f32.mxu0 %v394
        %1289 = vmatmul.mubr.f32.gmra.mrb[0].mxu0 %v393
        %v1290 = vpop.f32.mrb[0].mxu0
        %v1291 = vadd.f32 %v938, %v1290
        %v1292 = vpop.f32.mrb[0].mxu0
        %v1293 = vadd.f32 %v940, %v1292
        %1294 = vmatprep.mubr.f32.mxu0 %v400
        %1295 = vmatmul.mubr.f32.gmra.mrb[0].mxu0 %v399
        %v1296 = vpop.f32.mrb[0].mxu0
        %v1297 = vadd.f32 %v944, %v1296
        %v1298 = vpop.f32.mrb[0].mxu0
        %v1299 = vadd.f32 %v946, %v1298
        %1300 = vmatprep.mubr.f32.mxu0 %v406
        %1301 = vmatmul.mubr.f32.gmra.mrb[0].mxu0 %v405
        %v1302 = vpop.f32.mrb[0].mxu0
        %v1303 = vadd.f32 %v950, %v1302
        %v1304 = vpop.f32.mrb[0].mxu0
        %v1305 = vadd.f32 %v952, %v1304
        %1306 = vmatprep.mubr.f32.mxu0 %v412
        %1307 = vmatmul.mubr.f32.gmra.mrb[0].mxu0 %v411
        %v1308 = vpop.f32.mrb[0].mxu0
        %v1309 = vadd.f32 %v956, %v1308
        %v1310 = vpop.f32.mrb[0].mxu0
        %v1311 = vadd.f32 %v958, %v1310
        %1312 = vmatprep.mubr.f32.mxu0 %v418
        %1313 = vmatmul.mubr.f32.gmra.mrb[0].mxu0 %v417
        %v1314 = vpop.f32.mrb[0].mxu0
        %v1315 = vadd.f32 %v962, %v1314
        %v1316 = vpop.f32.mrb[0].mxu0
        %v1317 = vadd.f32 %v964, %v1316
        %1318 = vmatprep.mubr.f32.mxu0 %v424
        %1319 = vmatmul.mubr.f32.gmra.mrb[0].mxu0 %v423
        %v1320 = vpop.f32.mrb[0].mxu0
        %v1321 = vadd.f32 %v968, %v1320
        %v1322 = vpop.f32.mrb[0].mxu0
        %v1323 = vadd.f32 %v970, %v1322
        %1324 = vmatprep.mubr.f32.mxu0 %v430
        %1325 = vmatmul.mubr.f32.gmra.mrb[0].mxu0 %v429
        %v1326 = vpop.f32.mrb[0].mxu0
        %v1327 = vadd.f32 %v974, %v1326
        %v1328 = vpop.f32.mrb[0].mxu0
        %v1329 = vadd.f32 %v976, %v1328
        %1330 = vmatprep.mubr.f32.mxu0 %v436
        %1331 = vmatmul.mubr.f32.gmra.mrb[0].mxu0 %v435
        %v1332 = vpop.f32.mrb[0].mxu0
        %v1333 = vadd.f32 %v980, %v1332
        %v1334 = vpop.f32.mrb[0].mxu0
        %v1335 = vadd.f32 %v982, %v1334
        %1336 = vmatprep.mubr.f32.mxu0 %v442
        %1337 = vmatmul.mubr.f32.gmra.mrb[0].mxu0 %v441
        %v1338 = vpop.f32.mrb[0].mxu0
        %v1339 = vadd.f32 %v986, %v1338
        %v1340 = vpop.f32.mrb[0].mxu0
        %v1341 = vadd.f32 %v988, %v1340
        %1342 = vmatprep.mubr.f32.mxu0 %v448
        %1343 = vmatmul.mubr.f32.gmra.mrb[0].mxu0 %v447
        %v1344 = vpop.f32.mrb[0].mxu0
        %v1345 = vadd.f32 %v992, %v1344
        %v1346 = vpop.f32.mrb[0].mxu0
        %v1347 = vadd.f32 %v994, %v1346
        %1348 = vmatprep.mubr.f32.mxu0 %v454
        %1349 = vmatmul.mubr.f32.gmra.mrb[0].mxu0 %v453
        %v1350 = vpop.f32.mrb[0].mxu0
        %v1351 = vadd.f32 %v998, %v1350
        %v1352 = vpop.f32.mrb[0].mxu0
        %v1353 = vadd.f32 %v1000, %v1352
        %1354 = vmatprep.mubr.f32.mxu0 %v460
        %1355 = vmatmul.mubr.f32.gmra.mrb[0].mxu0 %v459
        %v1356 = vpop.f32.mrb[0].mxu0
        %v1357 = vadd.f32 %v1004, %v1356
        %v1358 = vpop.f32.mrb[0].mxu0
        %v1359 = vadd.f32 %v1006, %v1358
        %1360 = vmatprep.mubr.f32.mxu0 %v466
        %1361 = vmatmul.mubr.f32.gmra.mrb[0].mxu0 %v465
        %v1362 = vpop.f32.mrb[0].mxu0
        %v1363 = vadd.f32 %v1010, %v1362
        %v1364 = vpop.f32.mrb[0].mxu0
        %v1365 = vadd.f32 %v1012, %v1364
        %1366 = vmatprep.mubr.f32.mxu0 %v472
        %1367 = vmatmul.mubr.f32.gmra.mrb[0].mxu0 %v471
        %v1368 = vpop.f32.mrb[0].mxu0
        %v1369 = vadd.f32 %v1016, %v1368
        %v1370 = vpop.f32.mrb[0].mxu0
        %v1371 = vadd.f32 %v1018, %v1370
        %1372 = vmatprep.mubr.f32.mxu0 %v478
        %1373 = vmatmul.mubr.f32.gmra.mrb[0].mxu0 %v477
        %v1374 = vpop.f32.mrb[0].mxu0
        %v1375 = vadd.f32 %v1022, %v1374
        %v1376 = vpop.f32.mrb[0].mxu0
        %v1377 = vadd.f32 %v1024, %v1376
        %1378 = vmatprep.mubr.f32.mxu0 %v484
        %1379 = vmatmul.mubr.f32.gmra.mrb[0].mxu0 %v483
        %v1380 = vpop.f32.mrb[0].mxu0
        %v1381 = vadd.f32 %v1028, %v1380
        %v1382 = vpop.f32.mrb[0].mxu0
        %v1383 = vadd.f32 %v1030, %v1382
        %1384 = vmatprep.mubr.f32.mxu0 %v490
        %1385 = vmatmul.mubr.f32.gmra.mrb[0].mxu0 %v489
        %v1386 = vpop.f32.mrb[0].mxu0
        %v1387 = vadd.f32 %v1034, %v1386
        %v1388 = vpop.f32.mrb[0].mxu0
        %v1389 = vadd.f32 %v1036, %v1388
        %1390 = vmatprep.mubr.f32.mxu0 %v496
        %1391 = vmatmul.mubr.f32.gmra.mrb[0].mxu0 %v495
        %v1392 = vpop.f32.mrb[0].mxu0
        %v1393 = vadd.f32 %v1040, %v1392
        %v1394 = vpop.f32.mrb[0].mxu0
        %v1395 = vadd.f32 %v1042, %v1394
        %1396 = vmatprep.mubr.f32.mxu0 %v502
        %1397 = vmatmul.mubr.f32.gmra.mrb[0].mxu0 %v501
        %v1398 = vpop.f32.mrb[0].mxu0
        %v1399 = vadd.f32 %v1046, %v1398
        %v1400 = vpop.f32.mrb[0].mxu0
        %v1401 = vadd.f32 %v1048, %v1400
        %1402 = vmatprep.mubr.f32.mxu0 %v508
        %1403 = vmatmul.mubr.f32.gmra.mrb[0].mxu0 %v507
        %v1404 = vpop.f32.mrb[0].mxu0
        %v1405 = vadd.f32 %v1052, %v1404
        %v1406 = vpop.f32.mrb[0].mxu0
        %v1407 = vadd.f32 %v1054, %v1406
        %1408 = vmatprep.mubr.f32.mxu0 %v514
        %1409 = vmatmul.mubr.f32.gmra.mrb[0].mxu0 %v513
        %v1410 = vpop.f32.mrb[0].mxu0
        %v1411 = vadd.f32 %v1058, %v1410
        %v1412 = vpop.f32.mrb[0].mxu0
        %v1413 = vadd.f32 %v1060, %v1412
        %1414 = vmatprep.mubr.f32.mxu0 %v520
        %1415 = vmatmul.mubr.f32.gmra.mrb[0].mxu0 %v519
        %v1416 = vpop.f32.mrb[0].mxu0
        %v1417 = vadd.f32 %v1064, %v1416
        %v1418 = vpop.f32.mrb[0].mxu0
        %v1419 = vadd.f32 %v1066, %v1418
        %1420 = vmatprep.mubr.f32.mxu0 %v526
        %1421 = vmatmul.mubr.f32.gmra.mrb[0].mxu0 %v525
        %v1422 = vpop.f32.mrb[0].mxu0
        %v1423 = vadd.f32 %v1070, %v1422
        %v1424 = vpop.f32.mrb[0].mxu0
        %v1425 = vadd.f32 %v1072, %v1424
        %1426 = vmatprep.mubr.f32.mxu0 %v532
        %1427 = vmatmul.mubr.f32.gmra.mrb[0].mxu0 %v531
        %v1428 = vpop.f32.mrb[0].mxu0
        %v1429 = vadd.f32 %v1076, %v1428
        %v1430 = vpop.f32.mrb[0].mxu0
        %v1431 = vadd.f32 %v1078, %v1430
        %1432 = vmatprep.mubr.f32.mxu0 %v538
        %1433 = vmatmul.mubr.f32.gmra.mrb[0].mxu0 %v537
        %v1434 = vpop.f32.mrb[0].mxu0
        %v1435 = vadd.f32 %v1082, %v1434
        %v1436 = vpop.f32.mrb[0].mxu0
        %v1437 = vadd.f32 %v1084, %v1436
        %1438 = vmatprep.mubr.f32.mxu0 %v544
        %1439 = vmatmul.mubr.f32.gmra.mrb[0].mxu0 %v543
        %v1440 = vpop.f32.mrb[0].mxu0
        %v1441 = vadd.f32 %v1088, %v1440
        %v1442 = vpop.f32.mrb[0].mxu0
        %v1443 = vadd.f32 %v1090, %v1442
        %1444 = vdwg.mxu0
        %1445 = vmatprep.subr.mxu0 %v676
        %1446 = vmatpush1.msra.mxu0 %v675
        %1447 = vmatprep.subr.mxu0 %v678
        %1448 = vmatpush1.msra.mxu0 %v677
        %1449 = vmatprep.subr.mxu0 %v680
        %1450 = vmatpush1.msra.mxu0 %v679
        %1451 = vmatprep.subr.mxu0 %v682
        %1452 = vmatpush1.msra.mxu0 %v681
        %1453 = vmatprep.subr.mxu0 %v684
        %1454 = vmatpush1.msra.mxu0 %v683
        %1455 = vmatprep.subr.mxu0 %v686
        %1456 = vmatpush1.msra.mxu0 %v685
        %1457 = vmatprep.subr.mxu0 %v688
        %1458 = vmatpush1.msra.mxu0 %v687
        %1459 = vmatprep.subr.mxu0 %v690
        %1460 = vmatpush1.msra.mxu0 %v689
        %1461 = vmatprep.subr.mxu0 %v692
        %1462 = vmatpush1.msra.mxu0 %v691
        %1463 = vmatprep.subr.mxu0 %v694
        %1464 = vmatpush1.msra.mxu0 %v693
        %1465 = vmatprep.subr.mxu0 %v696
        %1466 = vmatpush1.msra.mxu0 %v695
        %1467 = vmatprep.subr.mxu0 %v698
        %1468 = vmatpush1.msra.mxu0 %v697
        %1469 = vmatprep.subr.mxu0 %v700
        %1470 = vmatpush1.msra.mxu0 %v699
        %1471 = vmatprep.subr.mxu0 %v702
        %1472 = vmatpush1.msra.mxu0 %v701
        %1473 = vmatprep.subr.mxu0 %v704
        %1474 = vmatpush1.msra.mxu0 %v703
        %1475 = vmatprep.subr.mxu0 %v706
        %1476 = vmatpush1.msra.mxu0 %v705
        %1477 = vmatprep.subr.mxu0 %v708
        %1478 = vmatpush1.msra.mxu0 %v707
        %1479 = vmatprep.subr.mxu0 %v710
        %1480 = vmatpush1.msra.mxu0 %v709
        %1481 = vmatprep.subr.mxu0 %v712
        %1482 = vmatpush1.msra.mxu0 %v711
        %1483 = vmatprep.subr.mxu0 %v714
        %1484 = vmatpush1.msra.mxu0 %v713
        %1485 = vmatprep.subr.mxu0 %v716
        %1486 = vmatpush1.msra.mxu0 %v715
        %1487 = vmatprep.subr.mxu0 %v718
        %1488 = vmatpush1.msra.mxu0 %v717
        %1489 = vmatprep.subr.mxu0 %v720
        %1490 = vmatpush1.msra.mxu0 %v719
        %1491 = vmatprep.subr.mxu0 %v722
        %1492 = vmatpush1.msra.mxu0 %v721
        %1493 = vmatprep.subr.mxu0 %v724
        %1494 = vmatpush1.msra.mxu0 %v723
        %1495 = vmatprep.subr.mxu0 %v726
        %1496 = vmatpush1.msra.mxu0 %v725
        %1497 = vmatprep.subr.mxu0 %v728
        %1498 = vmatpush1.msra.mxu0 %v727
        %1499 = vmatprep.subr.mxu0 %v730
        %1500 = vmatpush1.msra.mxu0 %v729
        %1501 = vmatprep.subr.mxu0 %v732
        %1502 = vmatpush1.msra.mxu0 %v731
        %1503 = vmatprep.subr.mxu0 %v734
        %1504 = vmatpush1.msra.mxu0 %v733
        %1505 = vmatprep.subr.mxu0 %v736
        %1506 = vmatpush1.msra.mxu0 %v735
        %1507 = vmatprep.subr.mxu0 %v738
        %1508 = vmatpush1.msra.mxu0 %v737
        %1509 = vmatprep.mubr.f32.mxu0 %v264
        %1510 = vmatmul.mubr.f32.gmra.mrb[0].mxu0 %v263
        %v1511 = vpop.f32.mrb[0].mxu0
        %v1512 = vadd.f32 %v1159, %v1511
        %v1513 = vpop.f32.mrb[0].mxu0
        %v1514 = vadd.f32 %v1161, %v1513
        %1515 = vmatprep.mubr.f32.mxu0 %v270
        %1516 = vmatmul.mubr.f32.gmra.mrb[0].mxu0 %v269
        %v1517 = vpop.f32.mrb[0].mxu0
        %v1518 = vadd.f32 %v1165, %v1517
        %v1519 = vpop.f32.mrb[0].mxu0
        %v1520 = vadd.f32 %v1167, %v1519
        %1521 = vmatprep.mubr.f32.mxu0 %v276
        %1522 = vmatmul.mubr.f32.gmra.mrb[0].mxu0 %v275
        %v1523 = vpop.f32.mrb[0].mxu0
        %v1524 = vadd.f32 %v1171, %v1523
        %v1525 = vpop.f32.mrb[0].mxu0
        %v1526 = vadd.f32 %v1173, %v1525
        %1527 = vmatprep.mubr.f32.mxu0 %v282
        %1528 = vmatmul.mubr.f32.gmra.mrb[0].mxu0 %v281
        %v1529 = vpop.f32.mrb[0].mxu0
        %v1530 = vadd.f32 %v1177, %v1529
        %v1531 = vpop.f32.mrb[0].mxu0
        %v1532 = vadd.f32 %v1179, %v1531
        %1533 = vmatprep.mubr.f32.mxu0 %v288
        %1534 = vmatmul.mubr.f32.gmra.mrb[0].mxu0 %v287
        %v1535 = vpop.f32.mrb[0].mxu0
        %v1536 = vadd.f32 %v1183, %v1535
        %v1537 = vpop.f32.mrb[0].mxu0
        %v1538 = vadd.f32 %v1185, %v1537
        %1539 = vmatprep.mubr.f32.mxu0 %v294
        %1540 = vmatmul.mubr.f32.gmra.mrb[0].mxu0 %v293
        %v1541 = vpop.f32.mrb[0].mxu0
        %v1542 = vadd.f32 %v1189, %v1541
        %v1543 = vpop.f32.mrb[0].mxu0
        %v1544 = vadd.f32 %v1191, %v1543
        %1545 = vmatprep.mubr.f32.mxu0 %v300
        %1546 = vmatmul.mubr.f32.gmra.mrb[0].mxu0 %v299
        %v1547 = vpop.f32.mrb[0].mxu0
        %v1548 = vadd.f32 %v1195, %v1547
        %v1549 = vpop.f32.mrb[0].mxu0
        %v1550 = vadd.f32 %v1197, %v1549
        %1551 = vmatprep.mubr.f32.mxu0 %v306
        %1552 = vmatmul.mubr.f32.gmra.mrb[0].mxu0 %v305
        %v1553 = vpop.f32.mrb[0].mxu0
        %v1554 = vadd.f32 %v1201, %v1553
        %v1555 = vpop.f32.mrb[0].mxu0
        %v1556 = vadd.f32 %v1203, %v1555
        %1557 = vmatprep.mubr.f32.mxu0 %v312
        %1558 = vmatmul.mubr.f32.gmra.mrb[0].mxu0 %v311
        %v1559 = vpop.f32.mrb[0].mxu0
        %v1560 = vadd.f32 %v1207, %v1559
        %v1561 = vpop.f32.mrb[0].mxu0
        %v1562 = vadd.f32 %v1209, %v1561
        %1563 = vmatprep.mubr.f32.mxu0 %v318
        %1564 = vmatmul.mubr.f32.gmra.mrb[0].mxu0 %v317
        %v1565 = vpop.f32.mrb[0].mxu0
        %v1566 = vadd.f32 %v1213, %v1565
        %v1567 = vpop.f32.mrb[0].mxu0
        %v1568 = vadd.f32 %v1215, %v1567
        %1569 = vmatprep.mubr.f32.mxu0 %v324
        %1570 = vmatmul.mubr.f32.gmra.mrb[0].mxu0 %v323
        %v1571 = vpop.f32.mrb[0].mxu0
        %v1572 = vadd.f32 %v1219, %v1571
        %v1573 = vpop.f32.mrb[0].mxu0
        %v1574 = vadd.f32 %v1221, %v1573
        %1575 = vmatprep.mubr.f32.mxu0 %v330
        %1576 = vmatmul.mubr.f32.gmra.mrb[0].mxu0 %v329
        %v1577 = vpop.f32.mrb[0].mxu0
        %v1578 = vadd.f32 %v1225, %v1577
        %v1579 = vpop.f32.mrb[0].mxu0
        %v1580 = vadd.f32 %v1227, %v1579
        %1581 = vmatprep.mubr.f32.mxu0 %v336
        %1582 = vmatmul.mubr.f32.gmra.mrb[0].mxu0 %v335
        %v1583 = vpop.f32.mrb[0].mxu0
        %v1584 = vadd.f32 %v1231, %v1583
        %v1585 = vpop.f32.mrb[0].mxu0
        %v1586 = vadd.f32 %v1233, %v1585
        %1587 = vmatprep.mubr.f32.mxu0 %v342
        %1588 = vmatmul.mubr.f32.gmra.mrb[0].mxu0 %v341
        %v1589 = vpop.f32.mrb[0].mxu0
        %v1590 = vadd.f32 %v1237, %v1589
        %v1591 = vpop.f32.mrb[0].mxu0
        %v1592 = vadd.f32 %v1239, %v1591
        %1593 = vmatprep.mubr.f32.mxu0 %v348
        %1594 = vmatmul.mubr.f32.gmra.mrb[0].mxu0 %v347
        %v1595 = vpop.f32.mrb[0].mxu0
        %v1596 = vadd.f32 %v1243, %v1595
        %v1597 = vpop.f32.mrb[0].mxu0
        %v1598 = vadd.f32 %v1245, %v1597
        %1599 = vmatprep.mubr.f32.mxu0 %v354
        %1600 = vmatmul.mubr.f32.gmra.mrb[0].mxu0 %v353
        %v1601 = vpop.f32.mrb[0].mxu0
        %v1602 = vadd.f32 %v1249, %v1601
        %v1603 = vpop.f32.mrb[0].mxu0
        %v1604 = vadd.f32 %v1251, %v1603
        %1605 = vmatprep.mubr.f32.mxu0 %v360
        %1606 = vmatmul.mubr.f32.gmra.mrb[0].mxu0 %v359
        %v1607 = vpop.f32.mrb[0].mxu0
        %v1608 = vadd.f32 %v1255, %v1607
        %v1609 = vpop.f32.mrb[0].mxu0
        %v1610 = vadd.f32 %v1257, %v1609
        %1611 = vmatprep.mubr.f32.mxu0 %v366
        %1612 = vmatmul.mubr.f32.gmra.mrb[0].mxu0 %v365
        %v1613 = vpop.f32.mrb[0].mxu0
        %v1614 = vadd.f32 %v1261, %v1613
        %v1615 = vpop.f32.mrb[0].mxu0
        %v1616 = vadd.f32 %v1263, %v1615
        %1617 = vmatprep.mubr.f32.mxu0 %v372
        %1618 = vmatmul.mubr.f32.gmra.mrb[0].mxu0 %v371
        %v1619 = vpop.f32.mrb[0].mxu0
        %v1620 = vadd.f32 %v1267, %v1619
        %v1621 = vpop.f32.mrb[0].mxu0
        %v1622 = vadd.f32 %v1269, %v1621
        %1623 = vmatprep.mubr.f32.mxu0 %v378
        %1624 = vmatmul.mubr.f32.gmra.mrb[0].mxu0 %v377
        %v1625 = vpop.f32.mrb[0].mxu0
        %v1626 = vadd.f32 %v1273, %v1625
        %v1627 = vpop.f32.mrb[0].mxu0
        %v1628 = vadd.f32 %v1275, %v1627
        %1629 = vmatprep.mubr.f32.mxu0 %v384
        %1630 = vmatmul.mubr.f32.gmra.mrb[0].mxu0 %v383
        %v1631 = vpop.f32.mrb[0].mxu0
        %v1632 = vadd.f32 %v1279, %v1631
        %v1633 = vpop.f32.mrb[0].mxu0
        %v1634 = vadd.f32 %v1281, %v1633
        %1635 = vmatprep.mubr.f32.mxu0 %v390
        %1636 = vmatmul.mubr.f32.gmra.mrb[0].mxu0 %v389
        %v1637 = vpop.f32.mrb[0].mxu0
        %v1638 = vadd.f32 %v1285, %v1637
        %v1639 = vpop.f32.mrb[0].mxu0
        %v1640 = vadd.f32 %v1287, %v1639
        %1641 = vmatprep.mubr.f32.mxu0 %v396
        %1642 = vmatmul.mubr.f32.gmra.mrb[0].mxu0 %v395
        %v1643 = vpop.f32.mrb[0].mxu0
        %v1644 = vadd.f32 %v1291, %v1643
        %v1645 = vpop.f32.mrb[0].mxu0
        %v1646 = vadd.f32 %v1293, %v1645
        %1647 = vmatprep.mubr.f32.mxu0 %v402
        %1648 = vmatmul.mubr.f32.gmra.mrb[0].mxu0 %v401
        %v1649 = vpop.f32.mrb[0].mxu0
        %v1650 = vadd.f32 %v1297, %v1649
        %v1651 = vpop.f32.mrb[0].mxu0
        %v1652 = vadd.f32 %v1299, %v1651
        %1653 = vmatprep.mubr.f32.mxu0 %v408
        %1654 = vmatmul.mubr.f32.gmra.mrb[0].mxu0 %v407
        %v1655 = vpop.f32.mrb[0].mxu0
        %v1656 = vadd.f32 %v1303, %v1655
        %v1657 = vpop.f32.mrb[0].mxu0
        %v1658 = vadd.f32 %v1305, %v1657
        %1659 = vmatprep.mubr.f32.mxu0 %v414
        %1660 = vmatmul.mubr.f32.gmra.mrb[0].mxu0 %v413
        %v1661 = vpop.f32.mrb[0].mxu0
        %v1662 = vadd.f32 %v1309, %v1661
        %v1663 = vpop.f32.mrb[0].mxu0
        %v1664 = vadd.f32 %v1311, %v1663
        %1665 = vmatprep.mubr.f32.mxu0 %v420
        %1666 = vmatmul.mubr.f32.gmra.mrb[0].mxu0 %v419
        %v1667 = vpop.f32.mrb[0].mxu0
        %v1668 = vadd.f32 %v1315, %v1667
        %v1669 = vpop.f32.mrb[0].mxu0
        %v1670 = vadd.f32 %v1317, %v1669
        %1671 = vmatprep.mubr.f32.mxu0 %v426
        %1672 = vmatmul.mubr.f32.gmra.mrb[0].mxu0 %v425
        %v1673 = vpop.f32.mrb[0].mxu0
        %v1674 = vadd.f32 %v1321, %v1673
        %v1675 = vpop.f32.mrb[0].mxu0
        %v1676 = vadd.f32 %v1323, %v1675
        %1677 = vmatprep.mubr.f32.mxu0 %v432
        %1678 = vmatmul.mubr.f32.gmra.mrb[0].mxu0 %v431
        %v1679 = vpop.f32.mrb[0].mxu0
        %v1680 = vadd.f32 %v1327, %v1679
        %v1681 = vpop.f32.mrb[0].mxu0
        %v1682 = vadd.f32 %v1329, %v1681
        %1683 = vmatprep.mubr.f32.mxu0 %v438
        %1684 = vmatmul.mubr.f32.gmra.mrb[0].mxu0 %v437
        %v1685 = vpop.f32.mrb[0].mxu0
        %v1686 = vadd.f32 %v1333, %v1685
        %v1687 = vpop.f32.mrb[0].mxu0
        %v1688 = vadd.f32 %v1335, %v1687
        %1689 = vmatprep.mubr.f32.mxu0 %v444
        %1690 = vmatmul.mubr.f32.gmra.mrb[0].mxu0 %v443
        %v1691 = vpop.f32.mrb[0].mxu0
        %v1692 = vadd.f32 %v1339, %v1691
        %v1693 = vpop.f32.mrb[0].mxu0
        %v1694 = vadd.f32 %v1341, %v1693
        %1695 = vmatprep.mubr.f32.mxu0 %v450
        %1696 = vmatmul.mubr.f32.gmra.mrb[0].mxu0 %v449
        %v1697 = vpop.f32.mrb[0].mxu0
        %v1698 = vadd.f32 %v1345, %v1697
        %v1699 = vpop.f32.mrb[0].mxu0
        %v1700 = vadd.f32 %v1347, %v1699
        %1701 = vmatprep.mubr.f32.mxu0 %v456
        %1702 = vmatmul.mubr.f32.gmra.mrb[0].mxu0 %v455
        %v1703 = vpop.f32.mrb[0].mxu0
        %v1704 = vadd.f32 %v1351, %v1703
        %v1705 = vpop.f32.mrb[0].mxu0
        %v1706 = vadd.f32 %v1353, %v1705
        %1707 = vmatprep.mubr.f32.mxu0 %v462
        %1708 = vmatmul.mubr.f32.gmra.mrb[0].mxu0 %v461
        %v1709 = vpop.f32.mrb[0].mxu0
        %v1710 = vadd.f32 %v1357, %v1709
        %v1711 = vpop.f32.mrb[0].mxu0
        %v1712 = vadd.f32 %v1359, %v1711
        %1713 = vmatprep.mubr.f32.mxu0 %v468
        %1714 = vmatmul.mubr.f32.gmra.mrb[0].mxu0 %v467
        %v1715 = vpop.f32.mrb[0].mxu0
        %v1716 = vadd.f32 %v1363, %v1715
        %v1717 = vpop.f32.mrb[0].mxu0
        %v1718 = vadd.f32 %v1365, %v1717
        %1719 = vmatprep.mubr.f32.mxu0 %v474
        %1720 = vmatmul.mubr.f32.gmra.mrb[0].mxu0 %v473
        %v1721 = vpop.f32.mrb[0].mxu0
        %v1722 = vadd.f32 %v1369, %v1721
        %v1723 = vpop.f32.mrb[0].mxu0
        %v1724 = vadd.f32 %v1371, %v1723
        %1725 = vmatprep.mubr.f32.mxu0 %v480
        %1726 = vmatmul.mubr.f32.gmra.mrb[0].mxu0 %v479
        %v1727 = vpop.f32.mrb[0].mxu0
        %v1728 = vadd.f32 %v1375, %v1727
        %v1729 = vpop.f32.mrb[0].mxu0
        %v1730 = vadd.f32 %v1377, %v1729
        %1731 = vmatprep.mubr.f32.mxu0 %v486
        %1732 = vmatmul.mubr.f32.gmra.mrb[0].mxu0 %v485
        %v1733 = vpop.f32.mrb[0].mxu0
        %v1734 = vadd.f32 %v1381, %v1733
        %v1735 = vpop.f32.mrb[0].mxu0
        %v1736 = vadd.f32 %v1383, %v1735
        %1737 = vmatprep.mubr.f32.mxu0 %v492
        %1738 = vmatmul.mubr.f32.gmra.mrb[0].mxu0 %v491
        %v1739 = vpop.f32.mrb[0].mxu0
        %v1740 = vadd.f32 %v1387, %v1739
        %v1741 = vpop.f32.mrb[0].mxu0
        %v1742 = vadd.f32 %v1389, %v1741
        %1743 = vmatprep.mubr.f32.mxu0 %v498
        %1744 = vmatmul.mubr.f32.gmra.mrb[0].mxu0 %v497
        %v1745 = vpop.f32.mrb[0].mxu0
        %v1746 = vadd.f32 %v1393, %v1745
        %v1747 = vpop.f32.mrb[0].mxu0
        %v1748 = vadd.f32 %v1395, %v1747
        %1749 = vmatprep.mubr.f32.mxu0 %v504
        %1750 = vmatmul.mubr.f32.gmra.mrb[0].mxu0 %v503
        %v1751 = vpop.f32.mrb[0].mxu0
        %v1752 = vadd.f32 %v1399, %v1751
        %v1753 = vpop.f32.mrb[0].mxu0
        %v1754 = vadd.f32 %v1401, %v1753
        %1755 = vmatprep.mubr.f32.mxu0 %v510
        %1756 = vmatmul.mubr.f32.gmra.mrb[0].mxu0 %v509
        %v1757 = vpop.f32.mrb[0].mxu0
        %v1758 = vadd.f32 %v1405, %v1757
        %v1759 = vpop.f32.mrb[0].mxu0
        %v1760 = vadd.f32 %v1407, %v1759
        %1761 = vmatprep.mubr.f32.mxu0 %v516
        %1762 = vmatmul.mubr.f32.gmra.mrb[0].mxu0 %v515
        %v1763 = vpop.f32.mrb[0].mxu0
        %v1764 = vadd.f32 %v1411, %v1763
        %v1765 = vpop.f32.mrb[0].mxu0
        %v1766 = vadd.f32 %v1413, %v1765
        %1767 = vmatprep.mubr.f32.mxu0 %v522
        %1768 = vmatmul.mubr.f32.gmra.mrb[0].mxu0 %v521
        %v1769 = vpop.f32.mrb[0].mxu0
        %v1770 = vadd.f32 %v1417, %v1769
        %v1771 = vpop.f32.mrb[0].mxu0
        %v1772 = vadd.f32 %v1419, %v1771
        %1773 = vmatprep.mubr.f32.mxu0 %v528
        %1774 = vmatmul.mubr.f32.gmra.mrb[0].mxu0 %v527
        %v1775 = vpop.f32.mrb[0].mxu0
        %v1776 = vadd.f32 %v1423, %v1775
        %v1777 = vpop.f32.mrb[0].mxu0
        %v1778 = vadd.f32 %v1425, %v1777
        %1779 = vmatprep.mubr.f32.mxu0 %v534
        %1780 = vmatmul.mubr.f32.gmra.mrb[0].mxu0 %v533
        %v1781 = vpop.f32.mrb[0].mxu0
        %v1782 = vadd.f32 %v1429, %v1781
        %v1783 = vpop.f32.mrb[0].mxu0
        %v1784 = vadd.f32 %v1431, %v1783
        %1785 = vmatprep.mubr.f32.mxu0 %v540
        %1786 = vmatmul.mubr.f32.gmra.mrb[0].mxu0 %v539
        %v1787 = vpop.f32.mrb[0].mxu0
        %v1788 = vadd.f32 %v1435, %v1787
        %v1789 = vpop.f32.mrb[0].mxu0
        %v1790 = vadd.f32 %v1437, %v1789
        %1791 = vmatprep.mubr.f32.mxu0 %v546
        %1792 = vmatmul.mubr.f32.gmra.mrb[0].mxu0 %v545
        %v1793 = vpop.f32.mrb[0].mxu0
        %v1794 = vadd.f32 %v1441, %v1793
        %v1795 = vpop.f32.mrb[0].mxu0
        %v1796 = vadd.f32 %v1443, %v1795
        %1797 = vdwg.mxu0
        %v1798 = vld [vmem:[%s244] sm:$0xff]
        %v1799 = vld [vmem:[%s244 + $0x8] sm:$0xff]
        %v1800 = vld [vmem:[%s244 + $0x10] sm:$0xff]
        %v1801 = vld [vmem:[%s244 + $0x18] sm:$0xff]
        %v1802 = vld [vmem:[%s244 + $0x20] sm:$0xff]
        %v1803 = vld [vmem:[%s244 + $0x28] sm:$0xff]
        %v1804 = vld [vmem:[%s244 + $0x30] sm:$0xff]
        %v1805 = vld [vmem:[%s244 + $0x38] sm:$0xff]
        %v1806 = vld [vmem:[%s244 + $0x40] sm:$0xff]
        %v1807 = vld [vmem:[%s244 + $0x48] sm:$0xff]
        %v1808 = vld [vmem:[%s244 + $0x50] sm:$0xff]
        %v1809 = vld [vmem:[%s244 + $0x58] sm:$0xff]
        %v1810 = vld [vmem:[%s244 + $0x60] sm:$0xff]
        %v1811 = vld [vmem:[%s244 + $0x68] sm:$0xff]
        %v1812 = vld [vmem:[%s244 + $0x70] sm:$0xff]
        %v1813 = vld [vmem:[%s244 + $0x78] sm:$0xff]
        %v1814 = vld [vmem:[%s244 + $0x80] sm:$0xff]
        %v1815 = vld [vmem:[%s244 + $0x88] sm:$0xff]
        %v1816 = vld [vmem:[%s244 + $0x90] sm:$0xff]
        %v1817 = vld [vmem:[%s244 + $0x98] sm:$0xff]
        %v1818 = vld [vmem:[%s244 + $0xa0] sm:$0xff]
        %v1819 = vld [vmem:[%s244 + $0xa8] sm:$0xff]
        %v1820 = vld [vmem:[%s244 + $0xb0] sm:$0xff]
        %v1821 = vld [vmem:[%s244 + $0xb8] sm:$0xff]
        %v1822 = vld [vmem:[%s244 + $0xc0] sm:$0xff]
        %v1823 = vld [vmem:[%s244 + $0xc8] sm:$0xff]
        %v1824 = vld [vmem:[%s244 + $0xd0] sm:$0xff]
        %v1825 = vld [vmem:[%s244 + $0xd8] sm:$0xff]
        %v1826 = vld [vmem:[%s244 + $0xe0] sm:$0xff]
        %v1827 = vld [vmem:[%s244 + $0xe8] sm:$0xff]
        %v1828 = vld [vmem:[%s244 + $0xf0] sm:$0xff]
        %v1829 = vld [vmem:[%s244 + $0xf8] sm:$0xff]
        %v1830 = vld [vmem:[%s244 + $0x100] sm:$0xff]
        %v1831 = vld [vmem:[%s244 + $0x108] sm:$0xff]
        %v1832 = vld [vmem:[%s244 + $0x110] sm:$0xff]
        %v1833 = vld [vmem:[%s244 + $0x118] sm:$0xff]
        %v1834 = vld [vmem:[%s244 + $0x120] sm:$0xff]
        %v1835 = vld [vmem:[%s244 + $0x128] sm:$0xff]
        %v1836 = vld [vmem:[%s244 + $0x130] sm:$0xff]
        %v1837 = vld [vmem:[%s244 + $0x138] sm:$0xff]
        %v1838 = vld [vmem:[%s244 + $0x140] sm:$0xff]
        %v1839 = vld [vmem:[%s244 + $0x148] sm:$0xff]
        %v1840 = vld [vmem:[%s244 + $0x150] sm:$0xff]
        %v1841 = vld [vmem:[%s244 + $0x158] sm:$0xff]
        %v1842 = vld [vmem:[%s244 + $0x160] sm:$0xff]
        %v1843 = vld [vmem:[%s244 + $0x168] sm:$0xff]
        %v1844 = vld [vmem:[%s244 + $0x170] sm:$0xff]
        %v1845 = vld [vmem:[%s244 + $0x178] sm:$0xff]
        %1847 = vset.pattern.permute.xlu0 0
        %1848 = vperm.xlu0 %1847, %v1798
        %v1849 = vpop.permute.xlu0 %1848
        %1852 = vset.pattern.permute.xlu0 0
        %1853 = vperm.xlu0 %1852, %v1799
        %v1854 = vpop.permute.xlu0 %1853
        %1857 = vset.pattern.permute.xlu0 0
        %1858 = vperm.xlu0 %1857, %v1800
        %v1859 = vpop.permute.xlu0 %1858
        %1862 = vset.pattern.permute.xlu0 0
        %1863 = vperm.xlu0 %1862, %v1801
        %v1864 = vpop.permute.xlu0 %1863
        %1867 = vset.pattern.permute.xlu0 0
        %1868 = vperm.xlu0 %1867, %v1802
        %v1869 = vpop.permute.xlu0 %1868
        %1872 = vset.pattern.permute.xlu0 0
        %1873 = vperm.xlu0 %1872, %v1803
        %v1874 = vpop.permute.xlu0 %1873
        %1877 = vset.pattern.permute.xlu0 0
        %1878 = vperm.xlu0 %1877, %v1804
        %v1879 = vpop.permute.xlu0 %1878
        %1882 = vset.pattern.permute.xlu0 0
        %1883 = vperm.xlu0 %1882, %v1805
        %v1884 = vpop.permute.xlu0 %1883
        %1887 = vset.pattern.permute.xlu0 0
        %1888 = vperm.xlu0 %1887, %v1806
        %v1889 = vpop.permute.xlu0 %1888
        %1892 = vset.pattern.permute.xlu0 0
        %1893 = vperm.xlu0 %1892, %v1807
        %v1894 = vpop.permute.xlu0 %1893
        %1897 = vset.pattern.permute.xlu0 0
        %1898 = vperm.xlu0 %1897, %v1808
        %v1899 = vpop.permute.xlu0 %1898
        %1902 = vset.pattern.permute.xlu0 0
        %1903 = vperm.xlu0 %1902, %v1809
        %v1904 = vpop.permute.xlu0 %1903
        %1907 = vset.pattern.permute.xlu0 0
        %1908 = vperm.xlu0 %1907, %v1810
        %v1909 = vpop.permute.xlu0 %1908
        %1912 = vset.pattern.permute.xlu0 0
        %1913 = vperm.xlu0 %1912, %v1811
        %v1914 = vpop.permute.xlu0 %1913
        %1917 = vset.pattern.permute.xlu0 0
        %1918 = vperm.xlu0 %1917, %v1812
        %v1919 = vpop.permute.xlu0 %1918
        %1922 = vset.pattern.permute.xlu0 0
        %1923 = vperm.xlu0 %1922, %v1813
        %v1924 = vpop.permute.xlu0 %1923
        %1927 = vset.pattern.permute.xlu0 0
        %1928 = vperm.xlu0 %1927, %v1814
        %v1929 = vpop.permute.xlu0 %1928
        %1932 = vset.pattern.permute.xlu0 0
        %1933 = vperm.xlu0 %1932, %v1815
        %v1934 = vpop.permute.xlu0 %1933
        %1937 = vset.pattern.permute.xlu0 0
        %1938 = vperm.xlu0 %1937, %v1816
        %v1939 = vpop.permute.xlu0 %1938
        %1942 = vset.pattern.permute.xlu0 0
        %1943 = vperm.xlu0 %1942, %v1817
        %v1944 = vpop.permute.xlu0 %1943
        %1947 = vset.pattern.permute.xlu0 0
        %1948 = vperm.xlu0 %1947, %v1818
        %v1949 = vpop.permute.xlu0 %1948
        %1952 = vset.pattern.permute.xlu0 0
        %1953 = vperm.xlu0 %1952, %v1819
        %v1954 = vpop.permute.xlu0 %1953
        %1957 = vset.pattern.permute.xlu0 0
        %1958 = vperm.xlu0 %1957, %v1820
        %v1959 = vpop.permute.xlu0 %1958
        %1962 = vset.pattern.permute.xlu0 0
        %1963 = vperm.xlu0 %1962, %v1821
        %v1964 = vpop.permute.xlu0 %1963
        %1967 = vset.pattern.permute.xlu0 0
        %1968 = vperm.xlu0 %1967, %v1822
        %v1969 = vpop.permute.xlu0 %1968
        %1972 = vset.pattern.permute.xlu0 0
        %1973 = vperm.xlu0 %1972, %v1823
        %v1974 = vpop.permute.xlu0 %1973
        %1977 = vset.pattern.permute.xlu0 0
        %1978 = vperm.xlu0 %1977, %v1824
        %v1979 = vpop.permute.xlu0 %1978
        %1982 = vset.pattern.permute.xlu0 0
        %1983 = vperm.xlu0 %1982, %v1825
        %v1984 = vpop.permute.xlu0 %1983
        %1987 = vset.pattern.permute.xlu0 0
        %1988 = vperm.xlu0 %1987, %v1826
        %v1989 = vpop.permute.xlu0 %1988
        %1992 = vset.pattern.permute.xlu0 0
        %1993 = vperm.xlu0 %1992, %v1827
        %v1994 = vpop.permute.xlu0 %1993
        %1997 = vset.pattern.permute.xlu0 0
        %1998 = vperm.xlu0 %1997, %v1828
        %v1999 = vpop.permute.xlu0 %1998
        %2002 = vset.pattern.permute.xlu0 0
        %2003 = vperm.xlu0 %2002, %v1829
        %v2004 = vpop.permute.xlu0 %2003
        %2007 = vset.pattern.permute.xlu0 0
        %2008 = vperm.xlu0 %2007, %v1830
        %v2009 = vpop.permute.xlu0 %2008
        %2012 = vset.pattern.permute.xlu0 0
        %2013 = vperm.xlu0 %2012, %v1831
        %v2014 = vpop.permute.xlu0 %2013
        %2017 = vset.pattern.permute.xlu0 0
        %2018 = vperm.xlu0 %2017, %v1832
        %v2019 = vpop.permute.xlu0 %2018
        %2022 = vset.pattern.permute.xlu0 0
        %2023 = vperm.xlu0 %2022, %v1833
        %v2024 = vpop.permute.xlu0 %2023
        %2027 = vset.pattern.permute.xlu0 0
        %2028 = vperm.xlu0 %2027, %v1834
        %v2029 = vpop.permute.xlu0 %2028
        %2032 = vset.pattern.permute.xlu0 0
        %2033 = vperm.xlu0 %2032, %v1835
        %v2034 = vpop.permute.xlu0 %2033
        %2037 = vset.pattern.permute.xlu0 0
        %2038 = vperm.xlu0 %2037, %v1836
        %v2039 = vpop.permute.xlu0 %2038
        %2042 = vset.pattern.permute.xlu0 0
        %2043 = vperm.xlu0 %2042, %v1837
        %v2044 = vpop.permute.xlu0 %2043
        %2047 = vset.pattern.permute.xlu0 0
        %2048 = vperm.xlu0 %2047, %v1838
        %v2049 = vpop.permute.xlu0 %2048
        %2052 = vset.pattern.permute.xlu0 0
        %2053 = vperm.xlu0 %2052, %v1839
        %v2054 = vpop.permute.xlu0 %2053
        %2057 = vset.pattern.permute.xlu0 0
        %2058 = vperm.xlu0 %2057, %v1840
        %v2059 = vpop.permute.xlu0 %2058
        %2062 = vset.pattern.permute.xlu0 0
        %2063 = vperm.xlu0 %2062, %v1841
        %v2064 = vpop.permute.xlu0 %2063
        %2067 = vset.pattern.permute.xlu0 0
        %2068 = vperm.xlu0 %2067, %v1842
        %v2069 = vpop.permute.xlu0 %2068
        %2072 = vset.pattern.permute.xlu0 0
        %2073 = vperm.xlu0 %2072, %v1843
        %v2074 = vpop.permute.xlu0 %2073
        %2077 = vset.pattern.permute.xlu0 0
        %2078 = vperm.xlu0 %2077, %v1844
        %v2079 = vpop.permute.xlu0 %2078
        %2082 = vset.pattern.permute.xlu0 0
        %2083 = vperm.xlu0 %2082, %v1845
        %v2084 = vpop.permute.xlu0 %2083
        %v2086 = vadd.f32 %v1512, %v1849
        %v2087 = vadd.f32 %v1514, %v1849
        %v2088 = vadd.f32 %v1518, %v1854
        %v2089 = vadd.f32 %v1520, %v1854
        %v2090 = vadd.f32 %v1524, %v1859
        %v2091 = vadd.f32 %v1526, %v1859
        %v2092 = vadd.f32 %v1530, %v1864
        %v2093 = vadd.f32 %v1532, %v1864
        %v2094 = vadd.f32 %v1536, %v1869
        %v2095 = vadd.f32 %v1538, %v1869
        %v2096 = vadd.f32 %v1542, %v1874
        %v2097 = vadd.f32 %v1544, %v1874
        %v2098 = vadd.f32 %v1548, %v1879
        %v2099 = vadd.f32 %v1550, %v1879
        %v2100 = vadd.f32 %v1554, %v1884
        %v2101 = vadd.f32 %v1556, %v1884
        %v2102 = vadd.f32 %v1560, %v1889
        %v2103 = vadd.f32 %v1562, %v1889
        %v2104 = vadd.f32 %v1566, %v1894
        %v2105 = vadd.f32 %v1568, %v1894
        %v2106 = vadd.f32 %v1572, %v1899
        %v2107 = vadd.f32 %v1574, %v1899
        %v2108 = vadd.f32 %v1578, %v1904
        %v2109 = vadd.f32 %v1580, %v1904
        %v2110 = vadd.f32 %v1584, %v1909
        %v2111 = vadd.f32 %v1586, %v1909
        %v2112 = vadd.f32 %v1590, %v1914
        %v2113 = vadd.f32 %v1592, %v1914
        %v2114 = vadd.f32 %v1596, %v1919
        %v2115 = vadd.f32 %v1598, %v1919
        %v2116 = vadd.f32 %v1602, %v1924
        %v2117 = vadd.f32 %v1604, %v1924
        %v2118 = vadd.f32 %v1608, %v1929
        %v2119 = vadd.f32 %v1610, %v1929
        %v2120 = vadd.f32 %v1614, %v1934
        %v2121 = vadd.f32 %v1616, %v1934
        %v2122 = vadd.f32 %v1620, %v1939
        %v2123 = vadd.f32 %v1622, %v1939
        %v2124 = vadd.f32 %v1626, %v1944
        %v2125 = vadd.f32 %v1628, %v1944
        %v2126 = vadd.f32 %v1632, %v1949
        %v2127 = vadd.f32 %v1634, %v1949
        %v2128 = vadd.f32 %v1638, %v1954
        %v2129 = vadd.f32 %v1640, %v1954
        %v2130 = vadd.f32 %v1644, %v1959
        %v2131 = vadd.f32 %v1646, %v1959
        %v2132 = vadd.f32 %v1650, %v1964
        %v2133 = vadd.f32 %v1652, %v1964
        %v2134 = vadd.f32 %v1656, %v1969
        %v2135 = vadd.f32 %v1658, %v1969
        %v2136 = vadd.f32 %v1662, %v1974
        %v2137 = vadd.f32 %v1664, %v1974
        %v2138 = vadd.f32 %v1668, %v1979
        %v2139 = vadd.f32 %v1670, %v1979
        %v2140 = vadd.f32 %v1674, %v1984
        %v2141 = vadd.f32 %v1676, %v1984
        %v2142 = vadd.f32 %v1680, %v1989
        %v2143 = vadd.f32 %v1682, %v1989
        %v2144 = vadd.f32 %v1686, %v1994
        %v2145 = vadd.f32 %v1688, %v1994
        %v2146 = vadd.f32 %v1692, %v1999
        %v2147 = vadd.f32 %v1694, %v1999
        %v2148 = vadd.f32 %v1698, %v2004
        %v2149 = vadd.f32 %v1700, %v2004
        %v2150 = vadd.f32 %v1704, %v2009
        %v2151 = vadd.f32 %v1706, %v2009
        %v2152 = vadd.f32 %v1710, %v2014
        %v2153 = vadd.f32 %v1712, %v2014
        %v2154 = vadd.f32 %v1716, %v2019
        %v2155 = vadd.f32 %v1718, %v2019
        %v2156 = vadd.f32 %v1722, %v2024
        %v2157 = vadd.f32 %v1724, %v2024
        %v2158 = vadd.f32 %v1728, %v2029
        %v2159 = vadd.f32 %v1730, %v2029
        %v2160 = vadd.f32 %v1734, %v2034
        %v2161 = vadd.f32 %v1736, %v2034
        %v2162 = vadd.f32 %v1740, %v2039
        %v2163 = vadd.f32 %v1742, %v2039
        %v2164 = vadd.f32 %v1746, %v2044
        %v2165 = vadd.f32 %v1748, %v2044
        %v2166 = vadd.f32 %v1752, %v2049
        %v2167 = vadd.f32 %v1754, %v2049
        %v2168 = vadd.f32 %v1758, %v2054
        %v2169 = vadd.f32 %v1760, %v2054
        %v2170 = vadd.f32 %v1764, %v2059
        %v2171 = vadd.f32 %v1766, %v2059
        %v2172 = vadd.f32 %v1770, %v2064
        %v2173 = vadd.f32 %v1772, %v2064
        %v2174 = vadd.f32 %v1776, %v2069
        %v2175 = vadd.f32 %v1778, %v2069
        %v2176 = vadd.f32 %v1782, %v2074
        %v2177 = vadd.f32 %v1784, %v2074
        %v2178 = vadd.f32 %v1788, %v2079
        %v2179 = vadd.f32 %v1790, %v2079
        %v2180 = vadd.f32 %v1794, %v2084
        %v2181 = vadd.f32 %v1796, %v2084
        %2182 = vst [vmem:[%s251] sm:$0xff] %v2086
        %vm2183 = vcmask 556032
        %2184 = vst.msk [vmem:[%s251 + $0x8] sm:$0xff] %vm2183, %v2087
        %2185 = vst [vmem:[%s251 + $0x10] sm:$0xff] %v2088
        %2186 = vst.msk [vmem:[%s251 + $0x18] sm:$0xff] %vm2183, %v2089
        %2187 = vst [vmem:[%s251 + $0x20] sm:$0xff] %v2090
        %2188 = vst.msk [vmem:[%s251 + $0x28] sm:$0xff] %vm2183, %v2091
        %2189 = vst [vmem:[%s251 + $0x30] sm:$0xff] %v2092
        %2190 = vst.msk [vmem:[%s251 + $0x38] sm:$0xff] %vm2183, %v2093
        %2191 = vst [vmem:[%s251 + $0x40] sm:$0xff] %v2094
        %2192 = vst.msk [vmem:[%s251 + $0x48] sm:$0xff] %vm2183, %v2095
        %2193 = vst [vmem:[%s251 + $0x50] sm:$0xff] %v2096
        %2194 = vst.msk [vmem:[%s251 + $0x58] sm:$0xff] %vm2183, %v2097
        %2195 = vst [vmem:[%s251 + $0x60] sm:$0xff] %v2098
        %2196 = vst.msk [vmem:[%s251 + $0x68] sm:$0xff] %vm2183, %v2099
        %2197 = vst [vmem:[%s251 + $0x70] sm:$0xff] %v2100
        %2198 = vst.msk [vmem:[%s251 + $0x78] sm:$0xff] %vm2183, %v2101
        %2199 = vst [vmem:[%s251 + $0x80] sm:$0xff] %v2102
        %2200 = vst.msk [vmem:[%s251 + $0x88] sm:$0xff] %vm2183, %v2103
        %2201 = vst [vmem:[%s251 + $0x90] sm:$0xff] %v2104
        %2202 = vst.msk [vmem:[%s251 + $0x98] sm:$0xff] %vm2183, %v2105
        %2203 = vst [vmem:[%s251 + $0xa0] sm:$0xff] %v2106
        %2204 = vst.msk [vmem:[%s251 + $0xa8] sm:$0xff] %vm2183, %v2107
        %2205 = vst [vmem:[%s251 + $0xb0] sm:$0xff] %v2108
        %2206 = vst.msk [vmem:[%s251 + $0xb8] sm:$0xff] %vm2183, %v2109
        %2207 = vst [vmem:[%s251 + $0xc0] sm:$0xff] %v2110
        %2208 = vst.msk [vmem:[%s251 + $0xc8] sm:$0xff] %vm2183, %v2111
        %2209 = vst [vmem:[%s251 + $0xd0] sm:$0xff] %v2112
        %2210 = vst.msk [vmem:[%s251 + $0xd8] sm:$0xff] %vm2183, %v2113
        %2211 = vst [vmem:[%s251 + $0xe0] sm:$0xff] %v2114
        %2212 = vst.msk [vmem:[%s251 + $0xe8] sm:$0xff] %vm2183, %v2115
        %2213 = vst [vmem:[%s251 + $0xf0] sm:$0xff] %v2116
        %2214 = vst.msk [vmem:[%s251 + $0xf8] sm:$0xff] %vm2183, %v2117
        %2215 = vst [vmem:[%s251 + $0x100] sm:$0xff] %v2118
        %2216 = vst.msk [vmem:[%s251 + $0x108] sm:$0xff] %vm2183, %v2119
        %2217 = vst [vmem:[%s251 + $0x110] sm:$0xff] %v2120
        %2218 = vst.msk [vmem:[%s251 + $0x118] sm:$0xff] %vm2183, %v2121
        %2219 = vst [vmem:[%s251 + $0x120] sm:$0xff] %v2122
        %2220 = vst.msk [vmem:[%s251 + $0x128] sm:$0xff] %vm2183, %v2123
        %2221 = vst [vmem:[%s251 + $0x130] sm:$0xff] %v2124
        %2222 = vst.msk [vmem:[%s251 + $0x138] sm:$0xff] %vm2183, %v2125
        %2223 = vst [vmem:[%s251 + $0x140] sm:$0xff] %v2126
        %2224 = vst.msk [vmem:[%s251 + $0x148] sm:$0xff] %vm2183, %v2127
        %2225 = vst [vmem:[%s251 + $0x150] sm:$0xff] %v2128
        %2226 = vst.msk [vmem:[%s251 + $0x158] sm:$0xff] %vm2183, %v2129
        %2227 = vst [vmem:[%s251 + $0x160] sm:$0xff] %v2130
        %2228 = vst.msk [vmem:[%s251 + $0x168] sm:$0xff] %vm2183, %v2131
        %2229 = vst [vmem:[%s251 + $0x170] sm:$0xff] %v2132
        %2230 = vst.msk [vmem:[%s251 + $0x178] sm:$0xff] %vm2183, %v2133
        %2231 = vst [vmem:[%s251 + $0x180] sm:$0xff] %v2134
        %2232 = vst.msk [vmem:[%s251 + $0x188] sm:$0xff] %vm2183, %v2135
        %2233 = vst [vmem:[%s251 + $0x190] sm:$0xff] %v2136
        %2234 = vst.msk [vmem:[%s251 + $0x198] sm:$0xff] %vm2183, %v2137
        %2235 = vst [vmem:[%s251 + $0x1a0] sm:$0xff] %v2138
        %2236 = vst.msk [vmem:[%s251 + $0x1a8] sm:$0xff] %vm2183, %v2139
        %2237 = vst [vmem:[%s251 + $0x1b0] sm:$0xff] %v2140
        %2238 = vst.msk [vmem:[%s251 + $0x1b8] sm:$0xff] %vm2183, %v2141
        %2239 = vst [vmem:[%s251 + $0x1c0] sm:$0xff] %v2142
        %2240 = vst.msk [vmem:[%s251 + $0x1c8] sm:$0xff] %vm2183, %v2143
        %2241 = vst [vmem:[%s251 + $0x1d0] sm:$0xff] %v2144
        %2242 = vst.msk [vmem:[%s251 + $0x1d8] sm:$0xff] %vm2183, %v2145
        %2243 = vst [vmem:[%s251 + $0x1e0] sm:$0xff] %v2146
        %2244 = vst.msk [vmem:[%s251 + $0x1e8] sm:$0xff] %vm2183, %v2147
        %2245 = vst [vmem:[%s251 + $0x1f0] sm:$0xff] %v2148
        %2246 = vst.msk [vmem:[%s251 + $0x1f8] sm:$0xff] %vm2183, %v2149
        %2247 = vst [vmem:[%s251 + $0x200] sm:$0xff] %v2150
        %2248 = vst.msk [vmem:[%s251 + $0x208] sm:$0xff] %vm2183, %v2151
        %2249 = vst [vmem:[%s251 + $0x210] sm:$0xff] %v2152
        %2250 = vst.msk [vmem:[%s251 + $0x218] sm:$0xff] %vm2183, %v2153
        %2251 = vst [vmem:[%s251 + $0x220] sm:$0xff] %v2154
        %2252 = vst.msk [vmem:[%s251 + $0x228] sm:$0xff] %vm2183, %v2155
        %2253 = vst [vmem:[%s251 + $0x230] sm:$0xff] %v2156
        %2254 = vst.msk [vmem:[%s251 + $0x238] sm:$0xff] %vm2183, %v2157
        %2255 = vst [vmem:[%s251 + $0x240] sm:$0xff] %v2158
        %2256 = vst.msk [vmem:[%s251 + $0x248] sm:$0xff] %vm2183, %v2159
        %2257 = vst [vmem:[%s251 + $0x250] sm:$0xff] %v2160
        %2258 = vst.msk [vmem:[%s251 + $0x258] sm:$0xff] %vm2183, %v2161
        %2259 = vst [vmem:[%s251 + $0x260] sm:$0xff] %v2162
        %2260 = vst.msk [vmem:[%s251 + $0x268] sm:$0xff] %vm2183, %v2163
        %2261 = vst [vmem:[%s251 + $0x270] sm:$0xff] %v2164
        %2262 = vst.msk [vmem:[%s251 + $0x278] sm:$0xff] %vm2183, %v2165
        %2263 = vst [vmem:[%s251 + $0x280] sm:$0xff] %v2166
        %2264 = vst.msk [vmem:[%s251 + $0x288] sm:$0xff] %vm2183, %v2167
        %2265 = vst [vmem:[%s251 + $0x290] sm:$0xff] %v2168
        %2266 = vst.msk [vmem:[%s251 + $0x298] sm:$0xff] %vm2183, %v2169
        %2267 = vst [vmem:[%s251 + $0x2a0] sm:$0xff] %v2170
        %2268 = vst.msk [vmem:[%s251 + $0x2a8] sm:$0xff] %vm2183, %v2171
        %2269 = vst [vmem:[%s251 + $0x2b0] sm:$0xff] %v2172
        %2270 = vst.msk [vmem:[%s251 + $0x2b8] sm:$0xff] %vm2183, %v2173
        %2271 = vst [vmem:[%s251 + $0x2c0] sm:$0xff] %v2174
        %2272 = vst.msk [vmem:[%s251 + $0x2c8] sm:$0xff] %vm2183, %v2175
        %2273 = vst [vmem:[%s251 + $0x2d0] sm:$0xff] %v2176
        %2274 = vst.msk [vmem:[%s251 + $0x2d8] sm:$0xff] %vm2183, %v2177
        %2275 = vst [vmem:[%s251 + $0x2e0] sm:$0xff] %v2178
        %2276 = vst.msk [vmem:[%s251 + $0x2e8] sm:$0xff] %vm2183, %v2179
        %2277 = vst [vmem:[%s251 + $0x2f0] sm:$0xff] %v2180
        %2278 = vst.msk [vmem:[%s251 + $0x2f8] sm:$0xff] %vm2183, %v2181
        %v2279 = vsel %vm2183, %v1514, 0.0
        %v2280 = vadd.f32 %v1512, %v2279
        %2281 = vadd.xlane.f32.xlu0 %v2280
        %v2282 = vpop.xlane.xlu0 %2281
        %v2283 = vsel %vm2183, %v1520, 0.0
        %v2284 = vadd.f32 %v1518, %v2283
        %2285 = vadd.xlane.f32.xlu0 %v2284
        %v2286 = vpop.xlane.xlu0 %2285
        %v2287 = vsel %vm2183, %v1526, 0.0
        %v2288 = vadd.f32 %v1524, %v2287
        %2289 = vadd.xlane.f32.xlu0 %v2288
        %v2290 = vpop.xlane.xlu0 %2289
        %v2291 = vsel %vm2183, %v1532, 0.0
        %v2292 = vadd.f32 %v1530, %v2291
        %2293 = vadd.xlane.f32.xlu0 %v2292
        %v2294 = vpop.xlane.xlu0 %2293
        %v2295 = vsel %vm2183, %v1538, 0.0
        %v2296 = vadd.f32 %v1536, %v2295
        %2297 = vadd.xlane.f32.xlu0 %v2296
        %v2298 = vpop.xlane.xlu0 %2297
        %v2299 = vsel %vm2183, %v1544, 0.0
        %v2300 = vadd.f32 %v1542, %v2299
        %2301 = vadd.xlane.f32.xlu0 %v2300
        %v2302 = vpop.xlane.xlu0 %2301
        %v2303 = vsel %vm2183, %v1550, 0.0
        %v2304 = vadd.f32 %v1548, %v2303
        %2305 = vadd.xlane.f32.xlu0 %v2304
        %v2306 = vpop.xlane.xlu0 %2305
        %v2307 = vsel %vm2183, %v1556, 0.0
        %v2308 = vadd.f32 %v1554, %v2307
        %2309 = vadd.xlane.f32.xlu0 %v2308
        %v2310 = vpop.xlane.xlu0 %2309
        %v2311 = vsel %vm2183, %v1562, 0.0
        %v2312 = vadd.f32 %v1560, %v2311
        %2313 = vadd.xlane.f32.xlu0 %v2312
        %v2314 = vpop.xlane.xlu0 %2313
        %v2315 = vsel %vm2183, %v1568, 0.0
        %v2316 = vadd.f32 %v1566, %v2315
        %2317 = vadd.xlane.f32.xlu0 %v2316
        %v2318 = vpop.xlane.xlu0 %2317
        %v2319 = vsel %vm2183, %v1574, 0.0
        %v2320 = vadd.f32 %v1572, %v2319
        %2321 = vadd.xlane.f32.xlu0 %v2320
        %v2322 = vpop.xlane.xlu0 %2321
        %v2323 = vsel %vm2183, %v1580, 0.0
        %v2324 = vadd.f32 %v1578, %v2323
        %2325 = vadd.xlane.f32.xlu0 %v2324
        %v2326 = vpop.xlane.xlu0 %2325
        %v2327 = vsel %vm2183, %v1586, 0.0
        %v2328 = vadd.f32 %v1584, %v2327
        %2329 = vadd.xlane.f32.xlu0 %v2328
        %v2330 = vpop.xlane.xlu0 %2329
        %v2331 = vsel %vm2183, %v1592, 0.0
        %v2332 = vadd.f32 %v1590, %v2331
        %2333 = vadd.xlane.f32.xlu0 %v2332
        %v2334 = vpop.xlane.xlu0 %2333
        %v2335 = vsel %vm2183, %v1598, 0.0
        %v2336 = vadd.f32 %v1596, %v2335
        %2337 = vadd.xlane.f32.xlu0 %v2336
        %v2338 = vpop.xlane.xlu0 %2337
        %v2339 = vsel %vm2183, %v1604, 0.0
        %v2340 = vadd.f32 %v1602, %v2339
        %2341 = vadd.xlane.f32.xlu0 %v2340
        %v2342 = vpop.xlane.xlu0 %2341
        %v2343 = vsel %vm2183, %v1610, 0.0
        %v2344 = vadd.f32 %v1608, %v2343
        %2345 = vadd.xlane.f32.xlu0 %v2344
        %v2346 = vpop.xlane.xlu0 %2345
        %v2347 = vsel %vm2183, %v1616, 0.0
        %v2348 = vadd.f32 %v1614, %v2347
        %2349 = vadd.xlane.f32.xlu0 %v2348
        %v2350 = vpop.xlane.xlu0 %2349
        %v2351 = vsel %vm2183, %v1622, 0.0
        %v2352 = vadd.f32 %v1620, %v2351
        %2353 = vadd.xlane.f32.xlu0 %v2352
        %v2354 = vpop.xlane.xlu0 %2353
        %v2355 = vsel %vm2183, %v1628, 0.0
        %v2356 = vadd.f32 %v1626, %v2355
        %2357 = vadd.xlane.f32.xlu0 %v2356
        %v2358 = vpop.xlane.xlu0 %2357
        %v2359 = vsel %vm2183, %v1634, 0.0
        %v2360 = vadd.f32 %v1632, %v2359
        %2361 = vadd.xlane.f32.xlu0 %v2360
        %v2362 = vpop.xlane.xlu0 %2361
        %v2363 = vsel %vm2183, %v1640, 0.0
        %v2364 = vadd.f32 %v1638, %v2363
        %2365 = vadd.xlane.f32.xlu0 %v2364
        %v2366 = vpop.xlane.xlu0 %2365
        %v2367 = vsel %vm2183, %v1646, 0.0
        %v2368 = vadd.f32 %v1644, %v2367
        %2369 = vadd.xlane.f32.xlu0 %v2368
        %v2370 = vpop.xlane.xlu0 %2369
        %v2371 = vsel %vm2183, %v1652, 0.0
        %v2372 = vadd.f32 %v1650, %v2371
        %2373 = vadd.xlane.f32.xlu0 %v2372
        %v2374 = vpop.xlane.xlu0 %2373
        %v2375 = vsel %vm2183, %v1658, 0.0
        %v2376 = vadd.f32 %v1656, %v2375
        %2377 = vadd.xlane.f32.xlu0 %v2376
        %v2378 = vpop.xlane.xlu0 %2377
        %v2379 = vsel %vm2183, %v1664, 0.0
        %v2380 = vadd.f32 %v1662, %v2379
        %2381 = vadd.xlane.f32.xlu0 %v2380
        %v2382 = vpop.xlane.xlu0 %2381
        %v2383 = vsel %vm2183, %v1670, 0.0
        %v2384 = vadd.f32 %v1668, %v2383
        %2385 = vadd.xlane.f32.xlu0 %v2384
        %v2386 = vpop.xlane.xlu0 %2385
        %v2387 = vsel %vm2183, %v1676, 0.0
        %v2388 = vadd.f32 %v1674, %v2387
        %2389 = vadd.xlane.f32.xlu0 %v2388
        %v2390 = vpop.xlane.xlu0 %2389
        %v2391 = vsel %vm2183, %v1682, 0.0
        %v2392 = vadd.f32 %v1680, %v2391
        %2393 = vadd.xlane.f32.xlu0 %v2392
        %v2394 = vpop.xlane.xlu0 %2393
        %v2395 = vsel %vm2183, %v1688, 0.0
        %v2396 = vadd.f32 %v1686, %v2395
        %2397 = vadd.xlane.f32.xlu0 %v2396
        %v2398 = vpop.xlane.xlu0 %2397
        %v2399 = vsel %vm2183, %v1694, 0.0
        %v2400 = vadd.f32 %v1692, %v2399
        %2401 = vadd.xlane.f32.xlu0 %v2400
        %v2402 = vpop.xlane.xlu0 %2401
        %v2403 = vsel %vm2183, %v1700, 0.0
        %v2404 = vadd.f32 %v1698, %v2403
        %2405 = vadd.xlane.f32.xlu0 %v2404
        %v2406 = vpop.xlane.xlu0 %2405
        %v2407 = vsel %vm2183, %v1706, 0.0
        %v2408 = vadd.f32 %v1704, %v2407
        %2409 = vadd.xlane.f32.xlu0 %v2408
        %v2410 = vpop.xlane.xlu0 %2409
        %v2411 = vsel %vm2183, %v1712, 0.0
        %v2412 = vadd.f32 %v1710, %v2411
        %2413 = vadd.xlane.f32.xlu0 %v2412
        %v2414 = vpop.xlane.xlu0 %2413
        %v2415 = vsel %vm2183, %v1718, 0.0
        %v2416 = vadd.f32 %v1716, %v2415
        %2417 = vadd.xlane.f32.xlu0 %v2416
        %v2418 = vpop.xlane.xlu0 %2417
        %v2419 = vsel %vm2183, %v1724, 0.0
        %v2420 = vadd.f32 %v1722, %v2419
        %2421 = vadd.xlane.f32.xlu0 %v2420
        %v2422 = vpop.xlane.xlu0 %2421
        %v2423 = vsel %vm2183, %v1730, 0.0
        %v2424 = vadd.f32 %v1728, %v2423
        %2425 = vadd.xlane.f32.xlu0 %v2424
        %v2426 = vpop.xlane.xlu0 %2425
        %v2427 = vsel %vm2183, %v1736, 0.0
        %v2428 = vadd.f32 %v1734, %v2427
        %2429 = vadd.xlane.f32.xlu0 %v2428
        %v2430 = vpop.xlane.xlu0 %2429
        %v2431 = vsel %vm2183, %v1742, 0.0
        %v2432 = vadd.f32 %v1740, %v2431
        %2433 = vadd.xlane.f32.xlu0 %v2432
        %v2434 = vpop.xlane.xlu0 %2433
        %v2435 = vsel %vm2183, %v1748, 0.0
        %v2436 = vadd.f32 %v1746, %v2435
        %2437 = vadd.xlane.f32.xlu0 %v2436
        %v2438 = vpop.xlane.xlu0 %2437
        %v2439 = vsel %vm2183, %v1754, 0.0
        %v2440 = vadd.f32 %v1752, %v2439
        %2441 = vadd.xlane.f32.xlu0 %v2440
        %v2442 = vpop.xlane.xlu0 %2441
        %v2443 = vsel %vm2183, %v1760, 0.0
        %v2444 = vadd.f32 %v1758, %v2443
        %2445 = vadd.xlane.f32.xlu0 %v2444
        %v2446 = vpop.xlane.xlu0 %2445
        %v2447 = vsel %vm2183, %v1766, 0.0
        %v2448 = vadd.f32 %v1764, %v2447
        %2449 = vadd.xlane.f32.xlu0 %v2448
        %v2450 = vpop.xlane.xlu0 %2449
        %v2451 = vsel %vm2183, %v1772, 0.0
        %v2452 = vadd.f32 %v1770, %v2451
        %2453 = vadd.xlane.f32.xlu0 %v2452
        %v2454 = vpop.xlane.xlu0 %2453
        %v2455 = vsel %vm2183, %v1778, 0.0
        %v2456 = vadd.f32 %v1776, %v2455
        %2457 = vadd.xlane.f32.xlu0 %v2456
        %v2458 = vpop.xlane.xlu0 %2457
        %v2459 = vsel %vm2183, %v1784, 0.0
        %v2460 = vadd.f32 %v1782, %v2459
        %2461 = vadd.xlane.f32.xlu0 %v2460
        %v2462 = vpop.xlane.xlu0 %2461
        %v2463 = vsel %vm2183, %v1790, 0.0
        %v2464 = vadd.f32 %v1788, %v2463
        %2465 = vadd.xlane.f32.xlu0 %v2464
        %v2466 = vpop.xlane.xlu0 %2465
        %v2467 = vsel %vm2183, %v1796, 0.0
        %v2468 = vadd.f32 %v1794, %v2467
        %2469 = vadd.xlane.f32.xlu0 %v2468
        %v2470 = vpop.xlane.xlu0 %2469
        %v2471 = vrcp.pop 196.0
        %v2472 = vmul.f32 %v2282, %v2471
        %v2473 = vmul.f32 %v2286, %v2471
        %v2474 = vmul.f32 %v2290, %v2471
        %v2475 = vmul.f32 %v2294, %v2471
        %v2476 = vmul.f32 %v2298, %v2471
        %v2477 = vmul.f32 %v2302, %v2471
        %v2478 = vmul.f32 %v2306, %v2471
        %v2479 = vmul.f32 %v2310, %v2471
        %v2480 = vmul.f32 %v2314, %v2471
        %v2481 = vmul.f32 %v2318, %v2471
        %v2482 = vmul.f32 %v2322, %v2471
        %v2483 = vmul.f32 %v2326, %v2471
        %v2484 = vmul.f32 %v2330, %v2471
        %v2485 = vmul.f32 %v2334, %v2471
        %v2486 = vmul.f32 %v2338, %v2471
        %v2487 = vmul.f32 %v2342, %v2471
        %v2488 = vmul.f32 %v2346, %v2471
        %v2489 = vmul.f32 %v2350, %v2471
        %v2490 = vmul.f32 %v2354, %v2471
        %v2491 = vmul.f32 %v2358, %v2471
        %v2492 = vmul.f32 %v2362, %v2471
        %v2493 = vmul.f32 %v2366, %v2471
        %v2494 = vmul.f32 %v2370, %v2471
        %v2495 = vmul.f32 %v2374, %v2471
        %v2496 = vmul.f32 %v2378, %v2471
        %v2497 = vmul.f32 %v2382, %v2471
        %v2498 = vmul.f32 %v2386, %v2471
        %v2499 = vmul.f32 %v2390, %v2471
        %v2500 = vmul.f32 %v2394, %v2471
        %v2501 = vmul.f32 %v2398, %v2471
        %v2502 = vmul.f32 %v2402, %v2471
        %v2503 = vmul.f32 %v2406, %v2471
        %v2504 = vmul.f32 %v2410, %v2471
        %v2505 = vmul.f32 %v2414, %v2471
        %v2506 = vmul.f32 %v2418, %v2471
        %v2507 = vmul.f32 %v2422, %v2471
        %v2508 = vmul.f32 %v2426, %v2471
        %v2509 = vmul.f32 %v2430, %v2471
        %v2510 = vmul.f32 %v2434, %v2471
        %v2511 = vmul.f32 %v2438, %v2471
        %v2512 = vmul.f32 %v2442, %v2471
        %v2513 = vmul.f32 %v2446, %v2471
        %v2514 = vmul.f32 %v2450, %v2471
        %v2515 = vmul.f32 %v2454, %v2471
        %v2516 = vmul.f32 %v2458, %v2471
        %v2517 = vmul.f32 %v2462, %v2471
        %v2518 = vmul.f32 %v2466, %v2471
        %v2519 = vmul.f32 %v2470, %v2471
        %v2520 = vadd.f32 %v2472, %v1798
        %v2521 = vadd.f32 %v2473, %v1799
        %v2522 = vadd.f32 %v2474, %v1800
        %v2523 = vadd.f32 %v2475, %v1801
        %v2524 = vadd.f32 %v2476, %v1802
        %v2525 = vadd.f32 %v2477, %v1803
        %v2526 = vadd.f32 %v2478, %v1804
        %v2527 = vadd.f32 %v2479, %v1805
        %v2528 = vadd.f32 %v2480, %v1806
        %v2529 = vadd.f32 %v2481, %v1807
        %v2530 = vadd.f32 %v2482, %v1808
        %v2531 = vadd.f32 %v2483, %v1809
        %v2532 = vadd.f32 %v2484, %v1810
        %v2533 = vadd.f32 %v2485, %v1811
        %v2534 = vadd.f32 %v2486, %v1812
        %v2535 = vadd.f32 %v2487, %v1813
        %v2536 = vadd.f32 %v2488, %v1814
        %v2537 = vadd.f32 %v2489, %v1815
        %v2538 = vadd.f32 %v2490, %v1816
        %v2539 = vadd.f32 %v2491, %v1817
        %v2540 = vadd.f32 %v2492, %v1818
        %v2541 = vadd.f32 %v2493, %v1819
        %v2542 = vadd.f32 %v2494, %v1820
        %v2543 = vadd.f32 %v2495, %v1821
        %v2544 = vadd.f32 %v2496, %v1822
        %v2545 = vadd.f32 %v2497, %v1823
        %v2546 = vadd.f32 %v2498, %v1824
        %v2547 = vadd.f32 %v2499, %v1825
        %v2548 = vadd.f32 %v2500, %v1826
        %v2549 = vadd.f32 %v2501, %v1827
        %v2550 = vadd.f32 %v2502, %v1828
        %v2551 = vadd.f32 %v2503, %v1829
        %v2552 = vadd.f32 %v2504, %v1830
        %v2553 = vadd.f32 %v2505, %v1831
        %v2554 = vadd.f32 %v2506, %v1832
        %v2555 = vadd.f32 %v2507, %v1833
        %v2556 = vadd.f32 %v2508, %v1834
        %v2557 = vadd.f32 %v2509, %v1835
        %v2558 = vadd.f32 %v2510, %v1836
        %v2559 = vadd.f32 %v2511, %v1837
        %v2560 = vadd.f32 %v2512, %v1838
        %v2561 = vadd.f32 %v2513, %v1839
        %v2562 = vadd.f32 %v2514, %v1840
        %v2563 = vadd.f32 %v2515, %v1841
        %v2564 = vadd.f32 %v2516, %v1842
        %v2565 = vadd.f32 %v2517, %v1843
        %v2566 = vadd.f32 %v2518, %v1844
        %v2567 = vadd.f32 %v2519, %v1845
        %vm2568 = vcmask 7168
        %2569 = vst.msk [vmem:[%s257] sm:$0xff] %vm2568, %v2520
        %2570 = vst.msk [vmem:[%s257 + $0x8] sm:$0xff] %vm2568, %v2521
        %2571 = vst.msk [vmem:[%s257 + $0x10] sm:$0xff] %vm2568, %v2522
        %2572 = vst.msk [vmem:[%s257 + $0x18] sm:$0xff] %vm2568, %v2523
        %2573 = vst.msk [vmem:[%s257 + $0x20] sm:$0xff] %vm2568, %v2524
        %2574 = vst.msk [vmem:[%s257 + $0x28] sm:$0xff] %vm2568, %v2525
        %2575 = vst.msk [vmem:[%s257 + $0x30] sm:$0xff] %vm2568, %v2526
        %2576 = vst.msk [vmem:[%s257 + $0x38] sm:$0xff] %vm2568, %v2527
        %2577 = vst.msk [vmem:[%s257 + $0x40] sm:$0xff] %vm2568, %v2528
        %2578 = vst.msk [vmem:[%s257 + $0x48] sm:$0xff] %vm2568, %v2529
        %2579 = vst.msk [vmem:[%s257 + $0x50] sm:$0xff] %vm2568, %v2530
        %2580 = vst.msk [vmem:[%s257 + $0x58] sm:$0xff] %vm2568, %v2531
        %2581 = vst.msk [vmem:[%s257 + $0x60] sm:$0xff] %vm2568, %v2532
        %2582 = vst.msk [vmem:[%s257 + $0x68] sm:$0xff] %vm2568, %v2533
        %2583 = vst.msk [vmem:[%s257 + $0x70] sm:$0xff] %vm2568, %v2534
        %2584 = vst.msk [vmem:[%s257 + $0x78] sm:$0xff] %vm2568, %v2535
        %2585 = vst.msk [vmem:[%s257 + $0x80] sm:$0xff] %vm2568, %v2536
        %2586 = vst.msk [vmem:[%s257 + $0x88] sm:$0xff] %vm2568, %v2537
        %2587 = vst.msk [vmem:[%s257 + $0x90] sm:$0xff] %vm2568, %v2538
        %2588 = vst.msk [vmem:[%s257 + $0x98] sm:$0xff] %vm2568, %v2539
        %2589 = vst.msk [vmem:[%s257 + $0xa0] sm:$0xff] %vm2568, %v2540
        %2590 = vst.msk [vmem:[%s257 + $0xa8] sm:$0xff] %vm2568, %v2541
        %2591 = vst.msk [vmem:[%s257 + $0xb0] sm:$0xff] %vm2568, %v2542
        %2592 = vst.msk [vmem:[%s257 + $0xb8] sm:$0xff] %vm2568, %v2543
        %2593 = vst.msk [vmem:[%s257 + $0xc0] sm:$0xff] %vm2568, %v2544
        %2594 = vst.msk [vmem:[%s257 + $0xc8] sm:$0xff] %vm2568, %v2545
        %2595 = vst.msk [vmem:[%s257 + $0xd0] sm:$0xff] %vm2568, %v2546
        %2596 = vst.msk [vmem:[%s257 + $0xd8] sm:$0xff] %vm2568, %v2547
        %2597 = vst.msk [vmem:[%s257 + $0xe0] sm:$0xff] %vm2568, %v2548
        %2598 = vst.msk [vmem:[%s257 + $0xe8] sm:$0xff] %vm2568, %v2549
        %2599 = vst.msk [vmem:[%s257 + $0xf0] sm:$0xff] %vm2568, %v2550
        %2600 = vst.msk [vmem:[%s257 + $0xf8] sm:$0xff] %vm2568, %v2551
        %2601 = vst.msk [vmem:[%s257 + $0x100] sm:$0xff] %vm2568, %v2552
        %2602 = vst.msk [vmem:[%s257 + $0x108] sm:$0xff] %vm2568, %v2553
        %2603 = vst.msk [vmem:[%s257 + $0x110] sm:$0xff] %vm2568, %v2554
        %2604 = vst.msk [vmem:[%s257 + $0x118] sm:$0xff] %vm2568, %v2555
        %2605 = vst.msk [vmem:[%s257 + $0x120] sm:$0xff] %vm2568, %v2556
        %2606 = vst.msk [vmem:[%s257 + $0x128] sm:$0xff] %vm2568, %v2557
        %2607 = vst.msk [vmem:[%s257 + $0x130] sm:$0xff] %vm2568, %v2558
        %2608 = vst.msk [vmem:[%s257 + $0x138] sm:$0xff] %vm2568, %v2559
        %2609 = vst.msk [vmem:[%s257 + $0x140] sm:$0xff] %vm2568, %v2560
        %2610 = vst.msk [vmem:[%s257 + $0x148] sm:$0xff] %vm2568, %v2561
        %2611 = vst.msk [vmem:[%s257 + $0x150] sm:$0xff] %vm2568, %v2562
        %2612 = vst.msk [vmem:[%s257 + $0x158] sm:$0xff] %vm2568, %v2563
        %2613 = vst.msk [vmem:[%s257 + $0x160] sm:$0xff] %vm2568, %v2564
        %2614 = vst.msk [vmem:[%s257 + $0x168] sm:$0xff] %vm2568, %v2565
        %2615 = vst.msk [vmem:[%s257 + $0x170] sm:$0xff] %vm2568, %v2566
        %2616 = vst.msk [vmem:[%s257 + $0x178] sm:$0xff] %vm2568, %v2567
        %s2617 = smul.u32 48, %s19
        %p2618 = scmp.lt.s32.totalorder %s2617, 95
        %s2619 = scalar_select %p2618, %s2617, 95
        %s2620 = smul.addr %s2619, 2
        %s2621 = smul.addr %s2620, 8
        %s2622 = scalar_lea.vmem %s3, %s2621
        %s2623 = smul.u32 48, %s19
        %p2624 = scmp.lt.s32.totalorder %s2623, 95
        %s2625 = scalar_select %p2624, %s2623, 95
        %s2626 = smul.addr %s2625, 8
        %s2627 = scalar_lea.vmem %s4, %s2626
        // Predicated region
        $region37: #{tpu_custom_call.1} parent=31 // pred_check
          %p2628 = pneg %p110
        $region38: #{tpu_custom_call.1} parent=31 // pred_check_branch
          %2630 = sbr.rel (%p2628) target = $region40
        $region39: #{tpu_custom_call.1} parent=31 // pred_region
          %s2631 = smul.u32 48, %s19
        $region40: #{tpu_custom_call.1} parent=31 // pred_fallthru
          _
        // Predicated region
        $region41: #{tpu_custom_call.1} parent=31 // pred_check
          %p2632 = pneg %p136
        $region42: #{tpu_custom_call.1} parent=31 // pred_check_branch
          %2634 = sbr.rel (%p2632) target = $region44
        $region43: #{tpu_custom_call.1} parent=31 // pred_region
          %s2635 = smul.u32 48, %s19
        $region44: #{tpu_custom_call.1} parent=31 // pred_fallthru
          _
      $region32: #{tpu_custom_call.1} parent=5 // pred_fallthru
        _
      %p2636 = scmp.le.s32.totalorder 2, %s14
      // Predicated region
      $region45: #{tpu_custom_call.1} parent=5 // pred_check
        %p2637 = pneg %p2636
      $region46: #{tpu_custom_call.1} parent=5 // pred_check_branch
        %2639 = sbr.rel (%p2637) target = $region48
      $region47: #{tpu_custom_call.1} parent=5 // pred_region
        %s2640 = ssub.s32 %s14, 2
        // Predicated region
        $region49: #{tpu_custom_call.1} parent=47 // pred_check
          %p2641 = pneg %p116
        $region50: #{tpu_custom_call.1} parent=47 // pred_check_branch
          %2643 = sbr.rel (%p2641) target = $region52
        $region51: #{tpu_custom_call.1} parent=47 // pred_region
          %s2644 = smul.u32 48, %s20
          %p2645 = scmp.lt.s32.totalorder %s2644, 95
          %s2646 = scalar_select %p2645, %s2644, 95
          %s2647 = smul.addr %s2646, 2
          %s2648 = smul.addr %s2647, 8
          %s2649 = scalar_lea.vmem %s3, %s2648
        $region52: #{tpu_custom_call.1} parent=47 // pred_fallthru
          _
        // Predicated region
        $region53: #{tpu_custom_call.1} parent=47 // pred_check
          %p2650 = pneg %p142
        $region54: #{tpu_custom_call.1} parent=47 // pred_check_branch
          %2652 = sbr.rel (%p2650) target = $region56
        $region55: #{tpu_custom_call.1} parent=47 // pred_region
          %s2653 = smul.u32 48, %s20
          %p2654 = scmp.lt.s32.totalorder %s2653, 95
          %s2655 = scalar_select %p2654, %s2653, 95
          %s2656 = smul.addr %s2655, 8
          %s2657 = scalar_lea.vmem %s4, %s2656
        $region56: #{tpu_custom_call.1} parent=47 // pred_fallthru
          _
      $region48: #{tpu_custom_call.1} parent=5 // pred_fallthru
        _
    $region6: #{tpu_custom_call.1} parent=1 // loop_footer
      %s18 = sadd.s32 1, %s14
    $region7: #{tpu_custom_call.1} parent=1 // loop_footer_branch
      %13 = sbr.rel target = $region3
    $region8: #{tpu_custom_call.1} parent=1 // loop_exit
      _
    %2658 = vsyncpa [#allocation3], 1
    %s2659 = scalar_lea.sflag [#allocation3], 1
    %2660 = vsyncpa %s2659, 1

</llo_original>
